<compile_context>
chip_gen: v5e
topology: v5e:2x2
jax: 0.10.0
libtpu: 0.0.40
codegen_flags: <defaults>
</compile_context>

<pallas_src>
import functools

import jax
import jax.numpy as jnp
import numpy as np
from jax.experimental import pallas as pl
from jax.experimental.pallas import tpu as pltpu

FEAT_CH = 125   # channel count expected by self.conv in the reference module
FEAT_PAD = 128  # lane-aligned padded channel count (extra channels are zero)
CF_BLK = 8      # feature-channel block (keeps live vregs small)


def _largest_divisor(n, candidates=(16, 8, 4, 2, 1)):
    for c in candidates:
        if n % c == 0:
            return c
    return 1


# ---------------------------------------------------------------------------
# Shared in-kernel helper: per-pixel scores for ONE image of the current block.
#   x_ref block: (BB, Cin, HW)   channels on sublanes, spatial on lanes
#   wfe: (Cf, Cin)  stand-in backbone 1x1-conv weight (padded to Cf=128)
#   bfe: (Cf, 1)    wc: (Cf, 1)  [nn.Conv2d(125,1,1), zero-padded]   bc: (1, 1)
# returns (1, HW) scores, lane-dense.
def _scores_row(x_ref, b, wfe, bfe, wc, bc, cf_blk):
    _, cin, hw = x_ref.shape
    cf = wfe.shape[0]
    # Hoisted sublane-broadcasts of the Cin=4 input rows: done once per image,
    # reused across every Cf chunk -> the MAC below is pure vmul+vadd.
    xb = [jnp.broadcast_to(x_ref[b, c:c + 1, :], (cf_blk, hw)) for c in range(cin)]
    part = jnp.zeros((cf_blk, hw), jnp.float32)
    for g in range(cf // cf_blk):                    # Cf blocked in chunks of 8
        lo = g * cf_blk
        acc = bfe[lo:lo + cf_blk]                    # (cf_blk, 1), broadcast in add
        for c in range(cin):                         # Cin=4 unrolled VPU MAC
            acc = acc + wfe[lo:lo + cf_blk, c:c + 1] * xb[c]
        # ReLU + fold the 125->1 conv weight chunk, accumulate elementwise so
        # no (Cf, HW) feature map is ever resident.
        part = part + jnp.maximum(acc, 0.0) * wc[lo:lo + cf_blk]
    # one small (cf_blk-deep) sublane reduce instead of a 128-deep one
    return jnp.sum(part, axis=0, keepdims=True) + bc                # (1, HW)


# ---------------------------------------------------------------------------
# mean(top-k(|scores|)) with torch.topk tie semantics.  v: (1, HW), v >= 0.
# Threshold method: rank_i = #{j : v_j > v_i}; t = min{v_i : rank_i < k} is the
# k-th largest value; top-k sum = sum(v > t) + t * (k - count(v > t)).
def _topk_abs_mean(v, k, hw_chunk, lane_iota, sub_iota):
    hw = v.shape[-1]
    kf = float(k)
    vb = jnp.broadcast_to(v, (hw_chunk, hw))         # hoisted sublane broadcast
    t_acc = jnp.full((hw_chunk, 1), jnp.inf, jnp.float32)
    # Chunks are independent -> their XLU reductions pipeline (no k-deep chain).
    for r in range(hw // hw_chunk):
        sel = lane_iota == (sub_iota + r * hw_chunk)                 # (chunk, HW)
        # exact "transpose" of this chunk of values (sum of one nonzero + zeros)
        vcol = jnp.sum(jnp.where(sel, vb, 0.0), axis=-1, keepdims=True)
        rank = jnp.sum(jnp.where(vb > vcol, 1.0, 0.0), axis=-1, keepdims=True)
        t_acc = jnp.minimum(t_acc, jnp.where(rank < kf, vcol, jnp.inf))
    t = jnp.min(t_acc, axis=0, keepdims=True)        # (1, 1): k-th largest value
    gt = v > t
    cnt = jnp.sum(jnp.where(gt, 1.0, 0.0), axis=-1, keepdims=True)
    tot = jnp.sum(jnp.where(gt, v, 0.0), axis=-1, keepdims=True)
    # values strictly above t, plus t counted with multiplicity (tie handling
    # identical to torch.topk's returned values).  NaN scores propagate to NaN.
    return (tot + t * (kf - cnt)) * (1.0 / kf)


# ---------------------------------------------------------------------------
# Fused kernel, pattern == 'topk': scores + mean of top-k(|scores|) (or mean).
def _scores_topk_kernel(x_ref, wfe_ref, bfe_ref, wc_ref, bc_ref, o_ref, *,
                        k, cf_blk, hw_chunk):
    bb, _, hw = x_ref.shape
    wfe = wfe_ref[...]
    bfe = bfe_ref[...]
    wc = wc_ref[...]
    bc = bc_ref[...]
    if k is not None:
        lane_iota = jax.lax.broadcasted_iota(jnp.int32, (hw_chunk, hw), 1)
        sub_iota = jax.lax.broadcasted_iota(jnp.int32, (hw_chunk, hw), 0)
    results = []
    for b in range(bb):                              # BB images per grid step
        s = _scores_row(x_ref, b, wfe, bfe, wc, bc, cf_blk)          # (1, HW)
        if k is None:                                # args.topk <= 0 -> mean
            results.append(jnp.mean(s, axis=-1, keepdims=True))
        else:
            results.append(_topk_abs_mean(jnp.abs(s), k, hw_chunk,
                                          lane_iota, sub_iota))
    row = results[0] if bb == 1 else jnp.concatenate(results, axis=-1)
    o_ref[0] = row                                   # one lane-packed (1, BB) store


def scores_topk(x, wfe_t, bfe, wc, bc, *, k):
    B, Cin, HW = x.shape
    Cf = wfe_t.shape[0]
    assert Cf % CF_BLK == 0
    # Batch blocking: amortize per-grid-step overhead but keep >= 2 grid steps
    # when possible so both v7x TensorCores stay engaged.
    BB = max(1, min(8, B // 2))
    GB = pl.cdiv(B, BB)
    Bpad = GB * BB
    if Bpad != B:
        x = jnp.pad(x, ((0, Bpad - B), (0, 0), (0, 0)))
    hw_chunk = _largest_divisor(HW)
    out = pl.pallas_call(
        functools.partial(_scores_topk_kernel, k=k, cf_blk=CF_BLK,
                          hw_chunk=hw_chunk),
        out_shape=jax.ShapeDtypeStruct((GB, 1, BB), jnp.float32),
        grid_spec=pltpu.PrefetchScalarGridSpec(
            num_scalar_prefetch=0,
            grid=(GB,),
            in_specs=[
                pl.BlockSpec((BB, Cin, HW), lambda g: (g, 0, 0)),
                pl.BlockSpec((Cf, Cin), lambda g: (0, 0)),
                pl.BlockSpec((Cf, 1), lambda g: (0, 0)),
                pl.BlockSpec((Cf, 1), lambda g: (0, 0)),
                pl.BlockSpec((1, 1), lambda g: (0, 0)),
            ],
            out_specs=pl.BlockSpec((1, 1, BB), lambda g: (g, 0, 0)),
        ),
        compiler_params=pltpu.CompilerParams(
            dimension_semantics=("parallel",)),      # v7x: both TCs split batch
    )(x, wfe_t, bfe, wc, bc)
    return out.reshape(Bpad, 1)[:B]


# ---------------------------------------------------------------------------
# Fused kernel, pattern == 'linear': scores + layer2(relu(layer1(flatten))).
def _scores_linear_kernel(x_ref, wfe_ref, bfe_ref, wc_ref, bc_ref,
                          w1t_ref, b1_ref, w2_ref, b2_ref, o_ref, *, cf_blk):
    wfe = wfe_ref[...]
    bfe = bfe_ref[...]
    wc = wc_ref[...]
    bc = bc_ref[...]
    h = b1_ref[...]                                  # (Hid, 1)
    # TODO(synk): for large batches split this loop over a parallel grid axis so
    # v7x's second TensorCore is used; at B=3 / HW=9 it is overhead-bound anyway.
    for b in range(x_ref.shape[0]):                  # tiny static B
        s_b = _scores_row(x_ref, b, wfe, bfe, wc, bc, cf_blk)        # (1, HW)
        # layer1 over the flattened (1, B*HW) scores accumulated per batch row:
        # flat @ W1 == sum_b s_b @ W1_b.  VPU multiply + lane reduce instead of
        # an M=1 MXU dot (avoids weight-push / result-pop latency).
        h = h + jnp.sum(w1t_ref[b] * s_b, axis=-1, keepdims=True)    # (Hid, 1)
    h = jnp.maximum(h, 0.0)
    # layer2: VPU multiply + sublane reduce (again no M=1 matmul).
    o_ref[...] = jnp.sum(h * w2_ref[...], axis=0, keepdims=True) + b2_ref[...]


def scores_linear(x, wfe_t, bfe, wc, bc, w1, b1, w2, b2):
    B, Cin, HW = x.shape
    Cf = wfe_t.shape[0]
    Hid = w1.shape[1]
    assert w1.shape[0] == B * HW, "linear head expects B*H*W inputs (27)"
    assert Cf % CF_BLK == 0
    # Per-batch-row slices of W1, transposed so the Hid axis is on sublanes and
    # the HW axis is lane-dense (row-major flatten order preserved).
    w1t = jnp.transpose(w1.reshape(B, HW, Hid), (0, 2, 1))           # (B, Hid, HW)
    b1c = b1.reshape(Hid, 1)
    return pl.pallas_call(
        functools.partial(_scores_linear_kernel, cf_blk=CF_BLK),
        out_shape=jax.ShapeDtypeStruct((1, 1), jnp.float32),
        grid_spec=pltpu.PrefetchScalarGridSpec(
            num_scalar_prefetch=0,
            grid=(1,),
            in_specs=[
                pl.BlockSpec((B, Cin, HW), lambda i: (0, 0, 0)),
                pl.BlockSpec((Cf, Cin), lambda i: (0, 0)),
                pl.BlockSpec((Cf, 1), lambda i: (0, 0)),
                pl.BlockSpec((Cf, 1), lambda i: (0, 0)),
                pl.BlockSpec((1, 1), lambda i: (0, 0)),
                pl.BlockSpec((B, Hid, HW), lambda i: (0, 0, 0)),
                pl.BlockSpec((Hid, 1), lambda i: (0, 0)),
                pl.BlockSpec((Hid, 1), lambda i: (0, 0)),
                pl.BlockSpec((1, 1), lambda i: (0, 0)),
            ],
            out_specs=pl.BlockSpec((1, 1), lambda i: (0, 0)),
        ),
    )(x, wfe_t, bfe, wc, bc, w1t, b1c, w2, b2)


# ---------------------------------------------------------------------------
# Parameter init (deterministic, PyTorch-default-like uniform bounds).
def init_params(key, c_in):
    ks = jax.random.split(key, 8)

    def u(k, shape, fan_in):
        bound = 1.0 / float(fan_in) ** 0.5
        return jax.random.uniform(k, shape, jnp.float32, -bound, bound)

    pad = FEAT_PAD - FEAT_CH
    return dict(
        # backbone stand-in (1x1 conv, transposed layout), zero-padded 125->128
        wfe_t=jnp.pad(u(ks[0], (FEAT_CH, c_in), c_in), ((0, pad), (0, 0))),
        bfe=jnp.pad(u(ks[1], (FEAT_CH, 1), c_in), ((0, pad), (0, 0))),
        # nn.Conv2d(125, 1, 1), zero-padded to 128 rows
        wc=jnp.pad(u(ks[2], (FEAT_CH, 1), FEAT_CH), ((0, pad), (0, 0))),
        bc=u(ks[3], (1, 1), FEAT_CH),
        w1=u(ks[4], (27, 9), 27),              # nn.Linear(27, 9)
        b1=u(ks[5], (1, 9), 27),
        w2=u(ks[6], (9, 1), 9),                # nn.Linear(9, 1)
        b2=u(ks[7], (1, 1), 9),
    )


# ---------------------------------------------------------------------------
# Forward pass mirroring SemiADNet.forward
def semi_adnet_forward(params, image, *, n_scales, pattern, topk):
    # image: NCHW float32, as in the PyTorch module.
    if n_scales == 0:
        raise ValueError
    B, C, H, W = image.shape
    HW = H * W
    x = image.reshape(B, C, HW)   # channels on sublanes, spatial on lanes

    # The reference `for s in range(n_scales)` loop recomputes identical
    # features/scores and keeps only the last result -> compute once.

    if pattern == "topk":
        # clamp k to HW (torch.topk would raise for k > HW)
        k = min(max(int(HW * topk), 1), HW) if topk > 0 else None
        per_image = scores_topk(x, params["wfe_t"], params["bfe"],
                                params["wc"], params["bc"], k=k)     # (B, 1)
        # image_pyramid has a single entry; cat + mean over dim 1 is identity.
        return per_image

    if pattern == "linear":
        return scores_linear(x, params["wfe_t"], params["bfe"],
                             params["wc"], params["bc"],
                             params["w1"], params["b1"],
                             params["w2"], params["b2"])             # (1, 1)

    raise ValueError(f"unknown pattern {pattern}")


# ---------------------------------------------------------------------------
# Pure-JAX reference (same stand-in backbone) for a correctness check.
def _reference_forward(params, image, *, n_scales, pattern, topk):
    if n_scales == 0:
        raise ValueError
    B, C, H, W = image.shape
    x = image.reshape(B, C, H * W)
    feat = jnp.maximum(
        jnp.einsum("fc,bch->bfh", params["wfe_t"], x) + params["bfe"][None], 0.0)
    scores = jnp.einsum("bfh,fo->bh", feat, params["wc"]) + params["bc"][0, 0]
    if pattern == "topk":
        if topk > 0:
            k = max(int(scores.shape[1] * topk), 1)
            vals = jax.lax.top_k(jnp.abs(scores), k)[0]
            return jnp.mean(vals, axis=1).reshape(-1, 1)
        return jnp.mean(scores, axis=1).reshape(-1, 1)
    if pattern == "linear":
        flat = scores.reshape(1, -1)
        h = jnp.maximum(flat @ params["w1"] + params["b1"], 0.0)
        return h @ params["w2"] + params["b2"]
    raise ValueError(pattern)


if __name__ == "__main__":
    key = jax.random.PRNGKey(0)
    k_img1, k_img2, k_par = jax.random.split(key, 3)
    params = init_params(k_par, c_in=4)

    # ---- 'topk' pattern demo:  batch=2, channels=4, spatial=16x16 ----------
    image = jax.random.normal(k_img1, (2, 4, 16, 16), jnp.float32)
    score_topk = semi_adnet_forward(params, image,
                                    n_scales=2, pattern="topk", topk=0.1)
    jax.block_until_ready(score_topk)
    assert score_topk.shape == (2, 1)
    ref_topk = _reference_forward(params, image,
                                  n_scales=2, pattern="topk", topk=0.1)
    np.testing.assert_allclose(np.asarray(score_topk), np.asarray(ref_topk),
                               rtol=1e-4, atol=1e-4)

    # ---- 'topk' pattern, topk<=0 (plain mean) path --------------------------
    score_mean = semi_adnet_forward(params, image,
                                    n_scales=1, pattern="topk", topk=0.0)
    jax.block_until_ready(score_mean)
    ref_mean = _reference_forward(params, image,
                                  n_scales=1, pattern="topk", topk=0.0)
    np.testing.assert_allclose(np.asarray(score_mean), np.asarray(ref_mean),
                               rtol=1e-4, atol=1e-4)

    # ---- 'linear' pattern demo: batch=3, channels=4, spatial=3x3 (3*9=27) ---
    image2 = jax.random.normal(k_img2, (3, 4, 3, 3), jnp.float32)
    score_lin = semi_adnet_forward(params, image2,
                                   n_scales=1, pattern="linear", topk=0.0)
    jax.block_until_ready(score_lin)
    assert score_lin.shape == (1, 1)
    ref_lin = _reference_forward(params, image2,
                                 n_scales=1, pattern="linear", topk=0.0)
    np.testing.assert_allclose(np.asarray(score_lin), np.asarray(ref_lin),
                               rtol=1e-4, atol=1e-4)

    print("KERNEL_OK")
</pallas_src>

<mosaic_0001>
module attributes {stable_mosaic.version = 11 : i64} {
  func.func @_scores_topk_kernel(%arg0: i32, %arg1: memref<1x4x256xf32, #tpu.memory_space<vmem>>, %arg2: memref<128x4xf32, #tpu.memory_space<vmem>>, %arg3: memref<128x1xf32, #tpu.memory_space<vmem>>, %arg4: memref<128x1xf32, #tpu.memory_space<vmem>>, %arg5: memref<1x1xf32, #tpu.memory_space<vmem>>, %arg6: memref<1x1x1xf32, #tpu.memory_space<vmem>>) attributes {dimension_semantics = [#tpu.dimension_semantics<parallel>], iteration_bounds = array<i64: 2>, scalar_prefetch = 0 : i64, scratch_operands = 0 : i64, tpu.core_type = #tpu.core_type<tc>, window_params = [{transform_indices = @transform_0, window_bounds = array<i64: 1, 4, 256>}, {pipeline_mode = #tpu.pipeline_mode<synchronous>, transform_indices = @transform_1, window_bounds = array<i64: 128, 4>}, {pipeline_mode = #tpu.pipeline_mode<synchronous>, transform_indices = @transform_2, window_bounds = array<i64: 128, 1>}, {pipeline_mode = #tpu.pipeline_mode<synchronous>, transform_indices = @transform_3, window_bounds = array<i64: 128, 1>}, {pipeline_mode = #tpu.pipeline_mode<synchronous>, transform_indices = @transform_4, window_bounds = array<i64: 1, 1>}, {transform_indices = @transform_5, window_bounds = array<i64: 1, 1, 1>}]} {
    %c0 = arith.constant 0 : index
    %c0_0 = arith.constant 0 : index
    %0 = vector.load %arg2[%c0, %c0_0] : memref<128x4xf32, #tpu.memory_space<vmem>>, vector<128x4xf32>
    %c0_1 = arith.constant 0 : index
    %c0_2 = arith.constant 0 : index
    %1 = vector.load %arg3[%c0_1, %c0_2] : memref<128x1xf32, #tpu.memory_space<vmem>>, vector<128x1xf32>
    %c0_3 = arith.constant 0 : index
    %c0_4 = arith.constant 0 : index
    %2 = vector.load %arg4[%c0_3, %c0_4] : memref<128x1xf32, #tpu.memory_space<vmem>>, vector<128x1xf32>
    %c0_5 = arith.constant 0 : index
    %c0_6 = arith.constant 0 : index
    %3 = vector.load %arg5[%c0_5, %c0_6] : memref<1x1xf32, #tpu.memory_space<vmem>>, vector<1x1xf32>
    %4 = tpu.iota {dimensions = array<i32: 1>} : vector<16x256xi32>
    %5 = tpu.iota {dimensions = array<i32: 0>} : vector<16x256xi32>
    %c0_7 = arith.constant 0 : index
    %c0_8 = arith.constant 0 : index
    %c0_9 = arith.constant 0 : index
    %6 = vector.load %arg1[%c0_7, %c0_8, %c0_9] : memref<1x4x256xf32, #tpu.memory_space<vmem>>, vector<1x1x256xf32>
    %7 = vector.shape_cast %6 : vector<1x1x256xf32> to vector<1x256xf32>
    %8 = vector.shape_cast %7 : vector<1x256xf32> to vector<1x256xf32>
    %9 = vector.broadcast %8 : vector<1x256xf32> to vector<8x256xf32>
    %c0_10 = arith.constant 0 : index
    %c1 = arith.constant 1 : index
    %c0_11 = arith.constant 0 : index
    %10 = vector.load %arg1[%c0_10, %c1, %c0_11] : memref<1x4x256xf32, #tpu.memory_space<vmem>>, vector<1x1x256xf32>
    %11 = vector.shape_cast %10 : vector<1x1x256xf32> to vector<1x256xf32>
    %12 = vector.shape_cast %11 : vector<1x256xf32> to vector<1x256xf32>
    %13 = vector.broadcast %12 : vector<1x256xf32> to vector<8x256xf32>
    %c0_12 = arith.constant 0 : index
    %c2 = arith.constant 2 : index
    %c0_13 = arith.constant 0 : index
    %14 = vector.load %arg1[%c0_12, %c2, %c0_13] : memref<1x4x256xf32, #tpu.memory_space<vmem>>, vector<1x1x256xf32>
    %15 = vector.shape_cast %14 : vector<1x1x256xf32> to vector<1x256xf32>
    %16 = vector.shape_cast %15 : vector<1x256xf32> to vector<1x256xf32>
    %17 = vector.broadcast %16 : vector<1x256xf32> to vector<8x256xf32>
    %c0_14 = arith.constant 0 : index
    %c3 = arith.constant 3 : index
    %c0_15 = arith.constant 0 : index
    %18 = vector.load %arg1[%c0_14, %c3, %c0_15] : memref<1x4x256xf32, #tpu.memory_space<vmem>>, vector<1x1x256xf32>
    %19 = vector.shape_cast %18 : vector<1x1x256xf32> to vector<1x256xf32>
    %20 = vector.shape_cast %19 : vector<1x256xf32> to vector<1x256xf32>
    %21 = vector.broadcast %20 : vector<1x256xf32> to vector<8x256xf32>
    %cst = arith.constant 0.000000e+00 : f32
    %22 = vector.broadcast %cst : f32 to vector<8x256xf32>
    %23 = vector.extract_strided_slice %1 {offsets = [0, 0], sizes = [8, 1], strides = [1, 1]} : vector<128x1xf32> to vector<8x1xf32>
    %24 = vector.extract_strided_slice %0 {offsets = [0, 0], sizes = [8, 1], strides = [1, 1]} : vector<128x4xf32> to vector<8x1xf32>
    %25 = vector.broadcast %24 : vector<8x1xf32> to vector<8x256xf32>
    %26 = arith.mulf %25, %9 : vector<8x256xf32>
    %27 = vector.broadcast %23 : vector<8x1xf32> to vector<8x256xf32>
    %28 = arith.addf %27, %26 : vector<8x256xf32>
    %29 = vector.extract_strided_slice %0 {offsets = [0, 1], sizes = [8, 1], strides = [1, 1]} : vector<128x4xf32> to vector<8x1xf32>
    %30 = vector.broadcast %29 : vector<8x1xf32> to vector<8x256xf32>
    %31 = arith.mulf %30, %13 : vector<8x256xf32>
    %32 = arith.addf %28, %31 : vector<8x256xf32>
    %33 = vector.extract_strided_slice %0 {offsets = [0, 2], sizes = [8, 1], strides = [1, 1]} : vector<128x4xf32> to vector<8x1xf32>
    %34 = vector.broadcast %33 : vector<8x1xf32> to vector<8x256xf32>
    %35 = arith.mulf %34, %17 : vector<8x256xf32>
    %36 = arith.addf %32, %35 : vector<8x256xf32>
    %37 = vector.extract_strided_slice %0 {offsets = [0, 3], sizes = [8, 1], strides = [1, 1]} : vector<128x4xf32> to vector<8x1xf32>
    %38 = vector.broadcast %37 : vector<8x1xf32> to vector<8x256xf32>
    %39 = arith.mulf %38, %21 : vector<8x256xf32>
    %40 = arith.addf %36, %39 : vector<8x256xf32>
    %cst_16 = arith.constant 0.000000e+00 : f32
    %41 = vector.broadcast %cst_16 : f32 to vector<8x256xf32>
    %42 = arith.maximumf %40, %41 : vector<8x256xf32>
    %43 = vector.extract_strided_slice %2 {offsets = [0, 0], sizes = [8, 1], strides = [1, 1]} : vector<128x1xf32> to vector<8x1xf32>
    %44 = vector.broadcast %43 : vector<8x1xf32> to vector<8x256xf32>
    %45 = arith.mulf %42, %44 : vector<8x256xf32>
    %46 = arith.addf %22, %45 : vector<8x256xf32>
    %47 = vector.extract_strided_slice %1 {offsets = [8, 0], sizes = [8, 1], strides = [1, 1]} : vector<128x1xf32> to vector<8x1xf32>
    %48 = vector.extract_strided_slice %0 {offsets = [8, 0], sizes = [8, 1], strides = [1, 1]} : vector<128x4xf32> to vector<8x1xf32>
    %49 = vector.broadcast %48 : vector<8x1xf32> to vector<8x256xf32>
    %50 = arith.mulf %49, %9 : vector<8x256xf32>
    %51 = vector.broadcast %47 : vector<8x1xf32> to vector<8x256xf32>
    %52 = arith.addf %51, %50 : vector<8x256xf32>
    %53 = vector.extract_strided_slice %0 {offsets = [8, 1], sizes = [8, 1], strides = [1, 1]} : vector<128x4xf32> to vector<8x1xf32>
    %54 = vector.broadcast %53 : vector<8x1xf32> to vector<8x256xf32>
    %55 = arith.mulf %54, %13 : vector<8x256xf32>
    %56 = arith.addf %52, %55 : vector<8x256xf32>
    %57 = vector.extract_strided_slice %0 {offsets = [8, 2], sizes = [8, 1], strides = [1, 1]} : vector<128x4xf32> to vector<8x1xf32>
    %58 = vector.broadcast %57 : vector<8x1xf32> to vector<8x256xf32>
    %59 = arith.mulf %58, %17 : vector<8x256xf32>
    %60 = arith.addf %56, %59 : vector<8x256xf32>
    %61 = vector.extract_strided_slice %0 {offsets = [8, 3], sizes = [8, 1], strides = [1, 1]} : vector<128x4xf32> to vector<8x1xf32>
    %62 = vector.broadcast %61 : vector<8x1xf32> to vector<8x256xf32>
    %63 = arith.mulf %62, %21 : vector<8x256xf32>
    %64 = arith.addf %60, %63 : vector<8x256xf32>
    %cst_17 = arith.constant 0.000000e+00 : f32
    %65 = vector.broadcast %cst_17 : f32 to vector<8x256xf32>
    %66 = arith.maximumf %64, %65 : vector<8x256xf32>
    %67 = vector.extract_strided_slice %2 {offsets = [8, 0], sizes = [8, 1], strides = [1, 1]} : vector<128x1xf32> to vector<8x1xf32>
    %68 = vector.broadcast %67 : vector<8x1xf32> to vector<8x256xf32>
    %69 = arith.mulf %66, %68 : vector<8x256xf32>
    %70 = arith.addf %46, %69 : vector<8x256xf32>
    %71 = vector.extract_strided_slice %1 {offsets = [16, 0], sizes = [8, 1], strides = [1, 1]} : vector<128x1xf32> to vector<8x1xf32>
    %72 = vector.extract_strided_slice %0 {offsets = [16, 0], sizes = [8, 1], strides = [1, 1]} : vector<128x4xf32> to vector<8x1xf32>
    %73 = vector.broadcast %72 : vector<8x1xf32> to vector<8x256xf32>
    %74 = arith.mulf %73, %9 : vector<8x256xf32>
    %75 = vector.broadcast %71 : vector<8x1xf32> to vector<8x256xf32>
    %76 = arith.addf %75, %74 : vector<8x256xf32>
    %77 = vector.extract_strided_slice %0 {offsets = [16, 1], sizes = [8, 1], strides = [1, 1]} : vector<128x4xf32> to vector<8x1xf32>
    %78 = vector.broadcast %77 : vector<8x1xf32> to vector<8x256xf32>
    %79 = arith.mulf %78, %13 : vector<8x256xf32>
    %80 = arith.addf %76, %79 : vector<8x256xf32>
    %81 = vector.extract_strided_slice %0 {offsets = [16, 2], sizes = [8, 1], strides = [1, 1]} : vector<128x4xf32> to vector<8x1xf32>
    %82 = vector.broadcast %81 : vector<8x1xf32> to vector<8x256xf32>
    %83 = arith.mulf %82, %17 : vector<8x256xf32>
    %84 = arith.addf %80, %83 : vector<8x256xf32>
    %85 = vector.extract_strided_slice %0 {offsets = [16, 3], sizes = [8, 1], strides = [1, 1]} : vector<128x4xf32> to vector<8x1xf32>
    %86 = vector.broadcast %85 : vector<8x1xf32> to vector<8x256xf32>
    %87 = arith.mulf %86, %21 : vector<8x256xf32>
    %88 = arith.addf %84, %87 : vector<8x256xf32>
    %cst_18 = arith.constant 0.000000e+00 : f32
    %89 = vector.broadcast %cst_18 : f32 to vector<8x256xf32>
    %90 = arith.maximumf %88, %89 : vector<8x256xf32>
    %91 = vector.extract_strided_slice %2 {offsets = [16, 0], sizes = [8, 1], strides = [1, 1]} : vector<128x1xf32> to vector<8x1xf32>
    %92 = vector.broadcast %91 : vector<8x1xf32> to vector<8x256xf32>
    %93 = arith.mulf %90, %92 : vector<8x256xf32>
    %94 = arith.addf %70, %93 : vector<8x256xf32>
    %95 = vector.extract_strided_slice %1 {offsets = [24, 0], sizes = [8, 1], strides = [1, 1]} : vector<128x1xf32> to vector<8x1xf32>
    %96 = vector.extract_strided_slice %0 {offsets = [24, 0], sizes = [8, 1], strides = [1, 1]} : vector<128x4xf32> to vector<8x1xf32>
    %97 = vector.broadcast %96 : vector<8x1xf32> to vector<8x256xf32>
    %98 = arith.mulf %97, %9 : vector<8x256xf32>
    %99 = vector.broadcast %95 : vector<8x1xf32> to vector<8x256xf32>
    %100 = arith.addf %99, %98 : vector<8x256xf32>
    %101 = vector.extract_strided_slice %0 {offsets = [24, 1], sizes = [8, 1], strides = [1, 1]} : vector<128x4xf32> to vector<8x1xf32>
    %102 = vector.broadcast %101 : vector<8x1xf32> to vector<8x256xf32>
    %103 = arith.mulf %102, %13 : vector<8x256xf32>
    %104 = arith.addf %100, %103 : vector<8x256xf32>
    %105 = vector.extract_strided_slice %0 {offsets = [24, 2], sizes = [8, 1], strides = [1, 1]} : vector<128x4xf32> to vector<8x1xf32>
    %106 = vector.broadcast %105 : vector<8x1xf32> to vector<8x256xf32>
    %107 = arith.mulf %106, %17 : vector<8x256xf32>
    %108 = arith.addf %104, %107 : vector<8x256xf32>
    %109 = vector.extract_strided_slice %0 {offsets = [24, 3], sizes = [8, 1], strides = [1, 1]} : vector<128x4xf32> to vector<8x1xf32>
    %110 = vector.broadcast %109 : vector<8x1xf32> to vector<8x256xf32>
    %111 = arith.mulf %110, %21 : vector<8x256xf32>
    %112 = arith.addf %108, %111 : vector<8x256xf32>
    %cst_19 = arith.constant 0.000000e+00 : f32
    %113 = vector.broadcast %cst_19 : f32 to vector<8x256xf32>
    %114 = arith.maximumf %112, %113 : vector<8x256xf32>
    %115 = vector.extract_strided_slice %2 {offsets = [24, 0], sizes = [8, 1], strides = [1, 1]} : vector<128x1xf32> to vector<8x1xf32>
    %116 = vector.broadcast %115 : vector<8x1xf32> to vector<8x256xf32>
    %117 = arith.mulf %114, %116 : vector<8x256xf32>
    %118 = arith.addf %94, %117 : vector<8x256xf32>
    %119 = vector.extract_strided_slice %1 {offsets = [32, 0], sizes = [8, 1], strides = [1, 1]} : vector<128x1xf32> to vector<8x1xf32>
    %120 = vector.extract_strided_slice %0 {offsets = [32, 0], sizes = [8, 1], strides = [1, 1]} : vector<128x4xf32> to vector<8x1xf32>
    %121 = vector.broadcast %120 : vector<8x1xf32> to vector<8x256xf32>
    %122 = arith.mulf %121, %9 : vector<8x256xf32>
    %123 = vector.broadcast %119 : vector<8x1xf32> to vector<8x256xf32>
    %124 = arith.addf %123, %122 : vector<8x256xf32>
    %125 = vector.extract_strided_slice %0 {offsets = [32, 1], sizes = [8, 1], strides = [1, 1]} : vector<128x4xf32> to vector<8x1xf32>
    %126 = vector.broadcast %125 : vector<8x1xf32> to vector<8x256xf32>
    %127 = arith.mulf %126, %13 : vector<8x256xf32>
    %128 = arith.addf %124, %127 : vector<8x256xf32>
    %129 = vector.extract_strided_slice %0 {offsets = [32, 2], sizes = [8, 1], strides = [1, 1]} : vector<128x4xf32> to vector<8x1xf32>
    %130 = vector.broadcast %129 : vector<8x1xf32> to vector<8x256xf32>
    %131 = arith.mulf %130, %17 : vector<8x256xf32>
    %132 = arith.addf %128, %131 : vector<8x256xf32>
    %133 = vector.extract_strided_slice %0 {offsets = [32, 3], sizes = [8, 1], strides = [1, 1]} : vector<128x4xf32> to vector<8x1xf32>
    %134 = vector.broadcast %133 : vector<8x1xf32> to vector<8x256xf32>
    %135 = arith.mulf %134, %21 : vector<8x256xf32>
    %136 = arith.addf %132, %135 : vector<8x256xf32>
    %cst_20 = arith.constant 0.000000e+00 : f32
    %137 = vector.broadcast %cst_20 : f32 to vector<8x256xf32>
    %138 = arith.maximumf %136, %137 : vector<8x256xf32>
    %139 = vector.extract_strided_slice %2 {offsets = [32, 0], sizes = [8, 1], strides = [1, 1]} : vector<128x1xf32> to vector<8x1xf32>
    %140 = vector.broadcast %139 : vector<8x1xf32> to vector<8x256xf32>
    %141 = arith.mulf %138, %140 : vector<8x256xf32>
    %142 = arith.addf %118, %141 : vector<8x256xf32>
    %143 = vector.extract_strided_slice %1 {offsets = [40, 0], sizes = [8, 1], strides = [1, 1]} : vector<128x1xf32> to vector<8x1xf32>
    %144 = vector.extract_strided_slice %0 {offsets = [40, 0], sizes = [8, 1], strides = [1, 1]} : vector<128x4xf32> to vector<8x1xf32>
    %145 = vector.broadcast %144 : vector<8x1xf32> to vector<8x256xf32>
    %146 = arith.mulf %145, %9 : vector<8x256xf32>
    %147 = vector.broadcast %143 : vector<8x1xf32> to vector<8x256xf32>
    %148 = arith.addf %147, %146 : vector<8x256xf32>
    %149 = vector.extract_strided_slice %0 {offsets = [40, 1], sizes = [8, 1], strides = [1, 1]} : vector<128x4xf32> to vector<8x1xf32>
    %150 = vector.broadcast %149 : vector<8x1xf32> to vector<8x256xf32>
    %151 = arith.mulf %150, %13 : vector<8x256xf32>
    %152 = arith.addf %148, %151 : vector<8x256xf32>
    %153 = vector.extract_strided_slice %0 {offsets = [40, 2], sizes = [8, 1], strides = [1, 1]} : vector<128x4xf32> to vector<8x1xf32>
    %154 = vector.broadcast %153 : vector<8x1xf32> to vector<8x256xf32>
    %155 = arith.mulf %154, %17 : vector<8x256xf32>
    %156 = arith.addf %152, %155 : vector<8x256xf32>
    %157 = vector.extract_strided_slice %0 {offsets = [40, 3], sizes = [8, 1], strides = [1, 1]} : vector<128x4xf32> to vector<8x1xf32>
    %158 = vector.broadcast %157 : vector<8x1xf32> to vector<8x256xf32>
    %159 = arith.mulf %158, %21 : vector<8x256xf32>
    %160 = arith.addf %156, %159 : vector<8x256xf32>
    %cst_21 = arith.constant 0.000000e+00 : f32
    %161 = vector.broadcast %cst_21 : f32 to vector<8x256xf32>
    %162 = arith.maximumf %160, %161 : vector<8x256xf32>
    %163 = vector.extract_strided_slice %2 {offsets = [40, 0], sizes = [8, 1], strides = [1, 1]} : vector<128x1xf32> to vector<8x1xf32>
    %164 = vector.broadcast %163 : vector<8x1xf32> to vector<8x256xf32>
    %165 = arith.mulf %162, %164 : vector<8x256xf32>
    %166 = arith.addf %142, %165 : vector<8x256xf32>
    %167 = vector.extract_strided_slice %1 {offsets = [48, 0], sizes = [8, 1], strides = [1, 1]} : vector<128x1xf32> to vector<8x1xf32>
    %168 = vector.extract_strided_slice %0 {offsets = [48, 0], sizes = [8, 1], strides = [1, 1]} : vector<128x4xf32> to vector<8x1xf32>
    %169 = vector.broadcast %168 : vector<8x1xf32> to vector<8x256xf32>
    %170 = arith.mulf %169, %9 : vector<8x256xf32>
    %171 = vector.broadcast %167 : vector<8x1xf32> to vector<8x256xf32>
    %172 = arith.addf %171, %170 : vector<8x256xf32>
    %173 = vector.extract_strided_slice %0 {offsets = [48, 1], sizes = [8, 1], strides = [1, 1]} : vector<128x4xf32> to vector<8x1xf32>
    %174 = vector.broadcast %173 : vector<8x1xf32> to vector<8x256xf32>
    %175 = arith.mulf %174, %13 : vector<8x256xf32>
    %176 = arith.addf %172, %175 : vector<8x256xf32>
    %177 = vector.extract_strided_slice %0 {offsets = [48, 2], sizes = [8, 1], strides = [1, 1]} : vector<128x4xf32> to vector<8x1xf32>
    %178 = vector.broadcast %177 : vector<8x1xf32> to vector<8x256xf32>
    %179 = arith.mulf %178, %17 : vector<8x256xf32>
    %180 = arith.addf %176, %179 : vector<8x256xf32>
    %181 = vector.extract_strided_slice %0 {offsets = [48, 3], sizes = [8, 1], strides = [1, 1]} : vector<128x4xf32> to vector<8x1xf32>
    %182 = vector.broadcast %181 : vector<8x1xf32> to vector<8x256xf32>
    %183 = arith.mulf %182, %21 : vector<8x256xf32>
    %184 = arith.addf %180, %183 : vector<8x256xf32>
    %cst_22 = arith.constant 0.000000e+00 : f32
    %185 = vector.broadcast %cst_22 : f32 to vector<8x256xf32>
    %186 = arith.maximumf %184, %185 : vector<8x256xf32>
    %187 = vector.extract_strided_slice %2 {offsets = [48, 0], sizes = [8, 1], strides = [1, 1]} : vector<128x1xf32> to vector<8x1xf32>
    %188 = vector.broadcast %187 : vector<8x1xf32> to vector<8x256xf32>
    %189 = arith.mulf %186, %188 : vector<8x256xf32>
    %190 = arith.addf %166, %189 : vector<8x256xf32>
    %191 = vector.extract_strided_slice %1 {offsets = [56, 0], sizes = [8, 1], strides = [1, 1]} : vector<128x1xf32> to vector<8x1xf32>
    %192 = vector.extract_strided_slice %0 {offsets = [56, 0], sizes = [8, 1], strides = [1, 1]} : vector<128x4xf32> to vector<8x1xf32>
    %193 = vector.broadcast %192 : vector<8x1xf32> to vector<8x256xf32>
    %194 = arith.mulf %193, %9 : vector<8x256xf32>
    %195 = vector.broadcast %191 : vector<8x1xf32> to vector<8x256xf32>
    %196 = arith.addf %195, %194 : vector<8x256xf32>
    %197 = vector.extract_strided_slice %0 {offsets = [56, 1], sizes = [8, 1], strides = [1, 1]} : vector<128x4xf32> to vector<8x1xf32>
    %198 = vector.broadcast %197 : vector<8x1xf32> to vector<8x256xf32>
    %199 = arith.mulf %198, %13 : vector<8x256xf32>
    %200 = arith.addf %196, %199 : vector<8x256xf32>
    %201 = vector.extract_strided_slice %0 {offsets = [56, 2], sizes = [8, 1], strides = [1, 1]} : vector<128x4xf32> to vector<8x1xf32>
    %202 = vector.broadcast %201 : vector<8x1xf32> to vector<8x256xf32>
    %203 = arith.mulf %202, %17 : vector<8x256xf32>
    %204 = arith.addf %200, %203 : vector<8x256xf32>
    %205 = vector.extract_strided_slice %0 {offsets = [56, 3], sizes = [8, 1], strides = [1, 1]} : vector<128x4xf32> to vector<8x1xf32>
    %206 = vector.broadcast %205 : vector<8x1xf32> to vector<8x256xf32>
    %207 = arith.mulf %206, %21 : vector<8x256xf32>
    %208 = arith.addf %204, %207 : vector<8x256xf32>
    %cst_23 = arith.constant 0.000000e+00 : f32
    %209 = vector.broadcast %cst_23 : f32 to vector<8x256xf32>
    %210 = arith.maximumf %208, %209 : vector<8x256xf32>
    %211 = vector.extract_strided_slice %2 {offsets = [56, 0], sizes = [8, 1], strides = [1, 1]} : vector<128x1xf32> to vector<8x1xf32>
    %212 = vector.broadcast %211 : vector<8x1xf32> to vector<8x256xf32>
    %213 = arith.mulf %210, %212 : vector<8x256xf32>
    %214 = arith.addf %190, %213 : vector<8x256xf32>
    %215 = vector.extract_strided_slice %1 {offsets = [64, 0], sizes = [8, 1], strides = [1, 1]} : vector<128x1xf32> to vector<8x1xf32>
    %216 = vector.extract_strided_slice %0 {offsets = [64, 0], sizes = [8, 1], strides = [1, 1]} : vector<128x4xf32> to vector<8x1xf32>
    %217 = vector.broadcast %216 : vector<8x1xf32> to vector<8x256xf32>
    %218 = arith.mulf %217, %9 : vector<8x256xf32>
    %219 = vector.broadcast %215 : vector<8x1xf32> to vector<8x256xf32>
    %220 = arith.addf %219, %218 : vector<8x256xf32>
    %221 = vector.extract_strided_slice %0 {offsets = [64, 1], sizes = [8, 1], strides = [1, 1]} : vector<128x4xf32> to vector<8x1xf32>
    %222 = vector.broadcast %221 : vector<8x1xf32> to vector<8x256xf32>
    %223 = arith.mulf %222, %13 : vector<8x256xf32>
    %224 = arith.addf %220, %223 : vector<8x256xf32>
    %225 = vector.extract_strided_slice %0 {offsets = [64, 2], sizes = [8, 1], strides = [1, 1]} : vector<128x4xf32> to vector<8x1xf32>
    %226 = vector.broadcast %225 : vector<8x1xf32> to vector<8x256xf32>
    %227 = arith.mulf %226, %17 : vector<8x256xf32>
    %228 = arith.addf %224, %227 : vector<8x256xf32>
    %229 = vector.extract_strided_slice %0 {offsets = [64, 3], sizes = [8, 1], strides = [1, 1]} : vector<128x4xf32> to vector<8x1xf32>
    %230 = vector.broadcast %229 : vector<8x1xf32> to vector<8x256xf32>
    %231 = arith.mulf %230, %21 : vector<8x256xf32>
    %232 = arith.addf %228, %231 : vector<8x256xf32>
    %cst_24 = arith.constant 0.000000e+00 : f32
    %233 = vector.broadcast %cst_24 : f32 to vector<8x256xf32>
    %234 = arith.maximumf %232, %233 : vector<8x256xf32>
    %235 = vector.extract_strided_slice %2 {offsets = [64, 0], sizes = [8, 1], strides = [1, 1]} : vector<128x1xf32> to vector<8x1xf32>
    %236 = vector.broadcast %235 : vector<8x1xf32> to vector<8x256xf32>
    %237 = arith.mulf %234, %236 : vector<8x256xf32>
    %238 = arith.addf %214, %237 : vector<8x256xf32>
    %239 = vector.extract_strided_slice %1 {offsets = [72, 0], sizes = [8, 1], strides = [1, 1]} : vector<128x1xf32> to vector<8x1xf32>
    %240 = vector.extract_strided_slice %0 {offsets = [72, 0], sizes = [8, 1], strides = [1, 1]} : vector<128x4xf32> to vector<8x1xf32>
    %241 = vector.broadcast %240 : vector<8x1xf32> to vector<8x256xf32>
    %242 = arith.mulf %241, %9 : vector<8x256xf32>
    %243 = vector.broadcast %239 : vector<8x1xf32> to vector<8x256xf32>
    %244 = arith.addf %243, %242 : vector<8x256xf32>
    %245 = vector.extract_strided_slice %0 {offsets = [72, 1], sizes = [8, 1], strides = [1, 1]} : vector<128x4xf32> to vector<8x1xf32>
    %246 = vector.broadcast %245 : vector<8x1xf32> to vector<8x256xf32>
    %247 = arith.mulf %246, %13 : vector<8x256xf32>
    %248 = arith.addf %244, %247 : vector<8x256xf32>
    %249 = vector.extract_strided_slice %0 {offsets = [72, 2], sizes = [8, 1], strides = [1, 1]} : vector<128x4xf32> to vector<8x1xf32>
    %250 = vector.broadcast %249 : vector<8x1xf32> to vector<8x256xf32>
    %251 = arith.mulf %250, %17 : vector<8x256xf32>
    %252 = arith.addf %248, %251 : vector<8x256xf32>
    %253 = vector.extract_strided_slice %0 {offsets = [72, 3], sizes = [8, 1], strides = [1, 1]} : vector<128x4xf32> to vector<8x1xf32>
    %254 = vector.broadcast %253 : vector<8x1xf32> to vector<8x256xf32>
    %255 = arith.mulf %254, %21 : vector<8x256xf32>
    %256 = arith.addf %252, %255 : vector<8x256xf32>
    %cst_25 = arith.constant 0.000000e+00 : f32
    %257 = vector.broadcast %cst_25 : f32 to vector<8x256xf32>
    %258 = arith.maximumf %256, %257 : vector<8x256xf32>
    %259 = vector.extract_strided_slice %2 {offsets = [72, 0], sizes = [8, 1], strides = [1, 1]} : vector<128x1xf32> to vector<8x1xf32>
    %260 = vector.broadcast %259 : vector<8x1xf32> to vector<8x256xf32>
    %261 = arith.mulf %258, %260 : vector<8x256xf32>
    %262 = arith.addf %238, %261 : vector<8x256xf32>
    %263 = vector.extract_strided_slice %1 {offsets = [80, 0], sizes = [8, 1], strides = [1, 1]} : vector<128x1xf32> to vector<8x1xf32>
    %264 = vector.extract_strided_slice %0 {offsets = [80, 0], sizes = [8, 1], strides = [1, 1]} : vector<128x4xf32> to vector<8x1xf32>
    %265 = vector.broadcast %264 : vector<8x1xf32> to vector<8x256xf32>
    %266 = arith.mulf %265, %9 : vector<8x256xf32>
    %267 = vector.broadcast %263 : vector<8x1xf32> to vector<8x256xf32>
    %268 = arith.addf %267, %266 : vector<8x256xf32>
    %269 = vector.extract_strided_slice %0 {offsets = [80, 1], sizes = [8, 1], strides = [1, 1]} : vector<128x4xf32> to vector<8x1xf32>
    %270 = vector.broadcast %269 : vector<8x1xf32> to vector<8x256xf32>
    %271 = arith.mulf %270, %13 : vector<8x256xf32>
    %272 = arith.addf %268, %271 : vector<8x256xf32>
    %273 = vector.extract_strided_slice %0 {offsets = [80, 2], sizes = [8, 1], strides = [1, 1]} : vector<128x4xf32> to vector<8x1xf32>
    %274 = vector.broadcast %273 : vector<8x1xf32> to vector<8x256xf32>
    %275 = arith.mulf %274, %17 : vector<8x256xf32>
    %276 = arith.addf %272, %275 : vector<8x256xf32>
    %277 = vector.extract_strided_slice %0 {offsets = [80, 3], sizes = [8, 1], strides = [1, 1]} : vector<128x4xf32> to vector<8x1xf32>
    %278 = vector.broadcast %277 : vector<8x1xf32> to vector<8x256xf32>
    %279 = arith.mulf %278, %21 : vector<8x256xf32>
    %280 = arith.addf %276, %279 : vector<8x256xf32>
    %cst_26 = arith.constant 0.000000e+00 : f32
    %281 = vector.broadcast %cst_26 : f32 to vector<8x256xf32>
    %282 = arith.maximumf %280, %281 : vector<8x256xf32>
    %283 = vector.extract_strided_slice %2 {offsets = [80, 0], sizes = [8, 1], strides = [1, 1]} : vector<128x1xf32> to vector<8x1xf32>
    %284 = vector.broadcast %283 : vector<8x1xf32> to vector<8x256xf32>
    %285 = arith.mulf %282, %284 : vector<8x256xf32>
    %286 = arith.addf %262, %285 : vector<8x256xf32>
    %287 = vector.extract_strided_slice %1 {offsets = [88, 0], sizes = [8, 1], strides = [1, 1]} : vector<128x1xf32> to vector<8x1xf32>
    %288 = vector.extract_strided_slice %0 {offsets = [88, 0], sizes = [8, 1], strides = [1, 1]} : vector<128x4xf32> to vector<8x1xf32>
    %289 = vector.broadcast %288 : vector<8x1xf32> to vector<8x256xf32>
    %290 = arith.mulf %289, %9 : vector<8x256xf32>
    %291 = vector.broadcast %287 : vector<8x1xf32> to vector<8x256xf32>
    %292 = arith.addf %291, %290 : vector<8x256xf32>
    %293 = vector.extract_strided_slice %0 {offsets = [88, 1], sizes = [8, 1], strides = [1, 1]} : vector<128x4xf32> to vector<8x1xf32>
    %294 = vector.broadcast %293 : vector<8x1xf32> to vector<8x256xf32>
    %295 = arith.mulf %294, %13 : vector<8x256xf32>
    %296 = arith.addf %292, %295 : vector<8x256xf32>
    %297 = vector.extract_strided_slice %0 {offsets = [88, 2], sizes = [8, 1], strides = [1, 1]} : vector<128x4xf32> to vector<8x1xf32>
    %298 = vector.broadcast %297 : vector<8x1xf32> to vector<8x256xf32>
    %299 = arith.mulf %298, %17 : vector<8x256xf32>
    %300 = arith.addf %296, %299 : vector<8x256xf32>
    %301 = vector.extract_strided_slice %0 {offsets = [88, 3], sizes = [8, 1], strides = [1, 1]} : vector<128x4xf32> to vector<8x1xf32>
    %302 = vector.broadcast %301 : vector<8x1xf32> to vector<8x256xf32>
    %303 = arith.mulf %302, %21 : vector<8x256xf32>
    %304 = arith.addf %300, %303 : vector<8x256xf32>
    %cst_27 = arith.constant 0.000000e+00 : f32
    %305 = vector.broadcast %cst_27 : f32 to vector<8x256xf32>
    %306 = arith.maximumf %304, %305 : vector<8x256xf32>
    %307 = vector.extract_strided_slice %2 {offsets = [88, 0], sizes = [8, 1], strides = [1, 1]} : vector<128x1xf32> to vector<8x1xf32>
    %308 = vector.broadcast %307 : vector<8x1xf32> to vector<8x256xf32>
    %309 = arith.mulf %306, %308 : vector<8x256xf32>
    %310 = arith.addf %286, %309 : vector<8x256xf32>
    %311 = vector.extract_strided_slice %1 {offsets = [96, 0], sizes = [8, 1], strides = [1, 1]} : vector<128x1xf32> to vector<8x1xf32>
    %312 = vector.extract_strided_slice %0 {offsets = [96, 0], sizes = [8, 1], strides = [1, 1]} : vector<128x4xf32> to vector<8x1xf32>
    %313 = vector.broadcast %312 : vector<8x1xf32> to vector<8x256xf32>
    %314 = arith.mulf %313, %9 : vector<8x256xf32>
    %315 = vector.broadcast %311 : vector<8x1xf32> to vector<8x256xf32>
    %316 = arith.addf %315, %314 : vector<8x256xf32>
    %317 = vector.extract_strided_slice %0 {offsets = [96, 1], sizes = [8, 1], strides = [1, 1]} : vector<128x4xf32> to vector<8x1xf32>
    %318 = vector.broadcast %317 : vector<8x1xf32> to vector<8x256xf32>
    %319 = arith.mulf %318, %13 : vector<8x256xf32>
    %320 = arith.addf %316, %319 : vector<8x256xf32>
    %321 = vector.extract_strided_slice %0 {offsets = [96, 2], sizes = [8, 1], strides = [1, 1]} : vector<128x4xf32> to vector<8x1xf32>
    %322 = vector.broadcast %321 : vector<8x1xf32> to vector<8x256xf32>
    %323 = arith.mulf %322, %17 : vector<8x256xf32>
    %324 = arith.addf %320, %323 : vector<8x256xf32>
    %325 = vector.extract_strided_slice %0 {offsets = [96, 3], sizes = [8, 1], strides = [1, 1]} : vector<128x4xf32> to vector<8x1xf32>
    %326 = vector.broadcast %325 : vector<8x1xf32> to vector<8x256xf32>
    %327 = arith.mulf %326, %21 : vector<8x256xf32>
    %328 = arith.addf %324, %327 : vector<8x256xf32>
    %cst_28 = arith.constant 0.000000e+00 : f32
    %329 = vector.broadcast %cst_28 : f32 to vector<8x256xf32>
    %330 = arith.maximumf %328, %329 : vector<8x256xf32>
    %331 = vector.extract_strided_slice %2 {offsets = [96, 0], sizes = [8, 1], strides = [1, 1]} : vector<128x1xf32> to vector<8x1xf32>
    %332 = vector.broadcast %331 : vector<8x1xf32> to vector<8x256xf32>
    %333 = arith.mulf %330, %332 : vector<8x256xf32>
    %334 = arith.addf %310, %333 : vector<8x256xf32>
    %335 = vector.extract_strided_slice %1 {offsets = [104, 0], sizes = [8, 1], strides = [1, 1]} : vector<128x1xf32> to vector<8x1xf32>
    %336 = vector.extract_strided_slice %0 {offsets = [104, 0], sizes = [8, 1], strides = [1, 1]} : vector<128x4xf32> to vector<8x1xf32>
    %337 = vector.broadcast %336 : vector<8x1xf32> to vector<8x256xf32>
    %338 = arith.mulf %337, %9 : vector<8x256xf32>
    %339 = vector.broadcast %335 : vector<8x1xf32> to vector<8x256xf32>
    %340 = arith.addf %339, %338 : vector<8x256xf32>
    %341 = vector.extract_strided_slice %0 {offsets = [104, 1], sizes = [8, 1], strides = [1, 1]} : vector<128x4xf32> to vector<8x1xf32>
    %342 = vector.broadcast %341 : vector<8x1xf32> to vector<8x256xf32>
    %343 = arith.mulf %342, %13 : vector<8x256xf32>
    %344 = arith.addf %340, %343 : vector<8x256xf32>
    %345 = vector.extract_strided_slice %0 {offsets = [104, 2], sizes = [8, 1], strides = [1, 1]} : vector<128x4xf32> to vector<8x1xf32>
    %346 = vector.broadcast %345 : vector<8x1xf32> to vector<8x256xf32>
    %347 = arith.mulf %346, %17 : vector<8x256xf32>
    %348 = arith.addf %344, %347 : vector<8x256xf32>
    %349 = vector.extract_strided_slice %0 {offsets = [104, 3], sizes = [8, 1], strides = [1, 1]} : vector<128x4xf32> to vector<8x1xf32>
    %350 = vector.broadcast %349 : vector<8x1xf32> to vector<8x256xf32>
    %351 = arith.mulf %350, %21 : vector<8x256xf32>
    %352 = arith.addf %348, %351 : vector<8x256xf32>
    %cst_29 = arith.constant 0.000000e+00 : f32
    %353 = vector.broadcast %cst_29 : f32 to vector<8x256xf32>
    %354 = arith.maximumf %352, %353 : vector<8x256xf32>
    %355 = vector.extract_strided_slice %2 {offsets = [104, 0], sizes = [8, 1], strides = [1, 1]} : vector<128x1xf32> to vector<8x1xf32>
    %356 = vector.broadcast %355 : vector<8x1xf32> to vector<8x256xf32>
    %357 = arith.mulf %354, %356 : vector<8x256xf32>
    %358 = arith.addf %334, %357 : vector<8x256xf32>
    %359 = vector.extract_strided_slice %1 {offsets = [112, 0], sizes = [8, 1], strides = [1, 1]} : vector<128x1xf32> to vector<8x1xf32>
    %360 = vector.extract_strided_slice %0 {offsets = [112, 0], sizes = [8, 1], strides = [1, 1]} : vector<128x4xf32> to vector<8x1xf32>
    %361 = vector.broadcast %360 : vector<8x1xf32> to vector<8x256xf32>
    %362 = arith.mulf %361, %9 : vector<8x256xf32>
    %363 = vector.broadcast %359 : vector<8x1xf32> to vector<8x256xf32>
    %364 = arith.addf %363, %362 : vector<8x256xf32>
    %365 = vector.extract_strided_slice %0 {offsets = [112, 1], sizes = [8, 1], strides = [1, 1]} : vector<128x4xf32> to vector<8x1xf32>
    %366 = vector.broadcast %365 : vector<8x1xf32> to vector<8x256xf32>
    %367 = arith.mulf %366, %13 : vector<8x256xf32>
    %368 = arith.addf %364, %367 : vector<8x256xf32>
    %369 = vector.extract_strided_slice %0 {offsets = [112, 2], sizes = [8, 1], strides = [1, 1]} : vector<128x4xf32> to vector<8x1xf32>
    %370 = vector.broadcast %369 : vector<8x1xf32> to vector<8x256xf32>
    %371 = arith.mulf %370, %17 : vector<8x256xf32>
    %372 = arith.addf %368, %371 : vector<8x256xf32>
    %373 = vector.extract_strided_slice %0 {offsets = [112, 3], sizes = [8, 1], strides = [1, 1]} : vector<128x4xf32> to vector<8x1xf32>
    %374 = vector.broadcast %373 : vector<8x1xf32> to vector<8x256xf32>
    %375 = arith.mulf %374, %21 : vector<8x256xf32>
    %376 = arith.addf %372, %375 : vector<8x256xf32>
    %cst_30 = arith.constant 0.000000e+00 : f32
    %377 = vector.broadcast %cst_30 : f32 to vector<8x256xf32>
    %378 = arith.maximumf %376, %377 : vector<8x256xf32>
    %379 = vector.extract_strided_slice %2 {offsets = [112, 0], sizes = [8, 1], strides = [1, 1]} : vector<128x1xf32> to vector<8x1xf32>
    %380 = vector.broadcast %379 : vector<8x1xf32> to vector<8x256xf32>
    %381 = arith.mulf %378, %380 : vector<8x256xf32>
    %382 = arith.addf %358, %381 : vector<8x256xf32>
    %383 = vector.extract_strided_slice %1 {offsets = [120, 0], sizes = [8, 1], strides = [1, 1]} : vector<128x1xf32> to vector<8x1xf32>
    %384 = vector.extract_strided_slice %0 {offsets = [120, 0], sizes = [8, 1], strides = [1, 1]} : vector<128x4xf32> to vector<8x1xf32>
    %385 = vector.broadcast %384 : vector<8x1xf32> to vector<8x256xf32>
    %386 = arith.mulf %385, %9 : vector<8x256xf32>
    %387 = vector.broadcast %383 : vector<8x1xf32> to vector<8x256xf32>
    %388 = arith.addf %387, %386 : vector<8x256xf32>
    %389 = vector.extract_strided_slice %0 {offsets = [120, 1], sizes = [8, 1], strides = [1, 1]} : vector<128x4xf32> to vector<8x1xf32>
    %390 = vector.broadcast %389 : vector<8x1xf32> to vector<8x256xf32>
    %391 = arith.mulf %390, %13 : vector<8x256xf32>
    %392 = arith.addf %388, %391 : vector<8x256xf32>
    %393 = vector.extract_strided_slice %0 {offsets = [120, 2], sizes = [8, 1], strides = [1, 1]} : vector<128x4xf32> to vector<8x1xf32>
    %394 = vector.broadcast %393 : vector<8x1xf32> to vector<8x256xf32>
    %395 = arith.mulf %394, %17 : vector<8x256xf32>
    %396 = arith.addf %392, %395 : vector<8x256xf32>
    %397 = vector.extract_strided_slice %0 {offsets = [120, 3], sizes = [8, 1], strides = [1, 1]} : vector<128x4xf32> to vector<8x1xf32>
    %398 = vector.broadcast %397 : vector<8x1xf32> to vector<8x256xf32>
    %399 = arith.mulf %398, %21 : vector<8x256xf32>
    %400 = arith.addf %396, %399 : vector<8x256xf32>
    %cst_31 = arith.constant 0.000000e+00 : f32
    %401 = vector.broadcast %cst_31 : f32 to vector<8x256xf32>
    %402 = arith.maximumf %400, %401 : vector<8x256xf32>
    %403 = vector.extract_strided_slice %2 {offsets = [120, 0], sizes = [8, 1], strides = [1, 1]} : vector<128x1xf32> to vector<8x1xf32>
    %404 = vector.broadcast %403 : vector<8x1xf32> to vector<8x256xf32>
    %405 = arith.mulf %402, %404 : vector<8x256xf32>
    %406 = arith.addf %382, %405 : vector<8x256xf32>
    %cst_32 = arith.constant dense<0.000000e+00> : vector<256xf32>
    %407 = vector.multi_reduction <add>, %406, %cst_32 [0] : vector<8x256xf32> to vector<256xf32>
    %408 = vector.shape_cast %407 : vector<256xf32> to vector<1x256xf32>
    %409 = vector.broadcast %3 : vector<1x1xf32> to vector<1x256xf32>
    %410 = arith.addf %408, %409 : vector<1x256xf32>
    %411 = math.absf %410 : vector<1x256xf32>
    %412 = vector.shape_cast %411 : vector<1x256xf32> to vector<1x256xf32>
    %413 = vector.broadcast %412 : vector<1x256xf32> to vector<16x256xf32>
    %cst_33 = arith.constant 0x7F800000 : f32
    %414 = vector.broadcast %cst_33 : f32 to vector<16x1xf32>
    %c0_i32 = arith.constant 0 : i32
    %415 = vector.broadcast %c0_i32 : i32 to vector<16x256xi32>
    %416 = arith.addi %5, %415 : vector<16x256xi32>
    %417 = arith.cmpi eq, %4, %416 : vector<16x256xi32>
    %cst_34 = arith.constant 0.000000e+00 : f32
    %418 = vector.broadcast %cst_34 : f32 to vector<16x256xf32>
    %419 = arith.select %417, %413, %418 : vector<16x256xi1>, vector<16x256xf32>
    %cst_35 = arith.constant dense<0.000000e+00> : vector<16xf32>
    %420 = vector.multi_reduction <add>, %419, %cst_35 [1] : vector<16x256xf32> to vector<16xf32>
    %421 = vector.shape_cast %420 : vector<16xf32> to vector<16x1xf32>
    %422 = vector.broadcast %421 : vector<16x1xf32> to vector<16x256xf32>
    %423 = arith.cmpf ogt, %413, %422 : vector<16x256xf32>
    %cst_36 = arith.constant 1.000000e+00 : f32
    %cst_37 = arith.constant 0.000000e+00 : f32
    %424 = vector.broadcast %cst_36 : f32 to vector<16x256xf32>
    %425 = vector.broadcast %cst_37 : f32 to vector<16x256xf32>
    %426 = arith.select %423, %424, %425 : vector<16x256xi1>, vector<16x256xf32>
    %cst_38 = arith.constant dense<0.000000e+00> : vector<16xf32>
    %427 = vector.multi_reduction <add>, %426, %cst_38 [1] : vector<16x256xf32> to vector<16xf32>
    %428 = vector.shape_cast %427 : vector<16xf32> to vector<16x1xf32>
    %cst_39 = arith.constant 2.500000e+01 : f32
    %429 = vector.broadcast %cst_39 : f32 to vector<16x1xf32>
    %430 = arith.cmpf olt, %428, %429 : vector<16x1xf32>
    %cst_40 = arith.constant 0x7F800000 : f32
    %431 = vector.broadcast %cst_40 : f32 to vector<16x1xf32>
    %432 = arith.select %430, %421, %431 : vector<16x1xi1>, vector<16x1xf32>
    %433 = arith.minimumf %414, %432 : vector<16x1xf32>
    %c16_i32 = arith.constant 16 : i32
    %434 = vector.broadcast %c16_i32 : i32 to vector<16x256xi32>
    %435 = arith.addi %5, %434 : vector<16x256xi32>
    %436 = arith.cmpi eq, %4, %435 : vector<16x256xi32>
    %cst_41 = arith.constant 0.000000e+00 : f32
    %437 = vector.broadcast %cst_41 : f32 to vector<16x256xf32>
    %438 = arith.select %436, %413, %437 : vector<16x256xi1>, vector<16x256xf32>
    %cst_42 = arith.constant dense<0.000000e+00> : vector<16xf32>
    %439 = vector.multi_reduction <add>, %438, %cst_42 [1] : vector<16x256xf32> to vector<16xf32>
    %440 = vector.shape_cast %439 : vector<16xf32> to vector<16x1xf32>
    %441 = vector.broadcast %440 : vector<16x1xf32> to vector<16x256xf32>
    %442 = arith.cmpf ogt, %413, %441 : vector<16x256xf32>
    %cst_43 = arith.constant 1.000000e+00 : f32
    %cst_44 = arith.constant 0.000000e+00 : f32
    %443 = vector.broadcast %cst_43 : f32 to vector<16x256xf32>
    %444 = vector.broadcast %cst_44 : f32 to vector<16x256xf32>
    %445 = arith.select %442, %443, %444 : vector<16x256xi1>, vector<16x256xf32>
    %cst_45 = arith.constant dense<0.000000e+00> : vector<16xf32>
    %446 = vector.multi_reduction <add>, %445, %cst_45 [1] : vector<16x256xf32> to vector<16xf32>
    %447 = vector.shape_cast %446 : vector<16xf32> to vector<16x1xf32>
    %cst_46 = arith.constant 2.500000e+01 : f32
    %448 = vector.broadcast %cst_46 : f32 to vector<16x1xf32>
    %449 = arith.cmpf olt, %447, %448 : vector<16x1xf32>
    %cst_47 = arith.constant 0x7F800000 : f32
    %450 = vector.broadcast %cst_47 : f32 to vector<16x1xf32>
    %451 = arith.select %449, %440, %450 : vector<16x1xi1>, vector<16x1xf32>
    %452 = arith.minimumf %433, %451 : vector<16x1xf32>
    %c32_i32 = arith.constant 32 : i32
    %453 = vector.broadcast %c32_i32 : i32 to vector<16x256xi32>
    %454 = arith.addi %5, %453 : vector<16x256xi32>
    %455 = arith.cmpi eq, %4, %454 : vector<16x256xi32>
    %cst_48 = arith.constant 0.000000e+00 : f32
    %456 = vector.broadcast %cst_48 : f32 to vector<16x256xf32>
    %457 = arith.select %455, %413, %456 : vector<16x256xi1>, vector<16x256xf32>
    %cst_49 = arith.constant dense<0.000000e+00> : vector<16xf32>
    %458 = vector.multi_reduction <add>, %457, %cst_49 [1] : vector<16x256xf32> to vector<16xf32>
    %459 = vector.shape_cast %458 : vector<16xf32> to vector<16x1xf32>
    %460 = vector.broadcast %459 : vector<16x1xf32> to vector<16x256xf32>
    %461 = arith.cmpf ogt, %413, %460 : vector<16x256xf32>
    %cst_50 = arith.constant 1.000000e+00 : f32
    %cst_51 = arith.constant 0.000000e+00 : f32
    %462 = vector.broadcast %cst_50 : f32 to vector<16x256xf32>
    %463 = vector.broadcast %cst_51 : f32 to vector<16x256xf32>
    %464 = arith.select %461, %462, %463 : vector<16x256xi1>, vector<16x256xf32>
    %cst_52 = arith.constant dense<0.000000e+00> : vector<16xf32>
    %465 = vector.multi_reduction <add>, %464, %cst_52 [1] : vector<16x256xf32> to vector<16xf32>
    %466 = vector.shape_cast %465 : vector<16xf32> to vector<16x1xf32>
    %cst_53 = arith.constant 2.500000e+01 : f32
    %467 = vector.broadcast %cst_53 : f32 to vector<16x1xf32>
    %468 = arith.cmpf olt, %466, %467 : vector<16x1xf32>
    %cst_54 = arith.constant 0x7F800000 : f32
    %469 = vector.broadcast %cst_54 : f32 to vector<16x1xf32>
    %470 = arith.select %468, %459, %469 : vector<16x1xi1>, vector<16x1xf32>
    %471 = arith.minimumf %452, %470 : vector<16x1xf32>
    %c48_i32 = arith.constant 48 : i32
    %472 = vector.broadcast %c48_i32 : i32 to vector<16x256xi32>
    %473 = arith.addi %5, %472 : vector<16x256xi32>
    %474 = arith.cmpi eq, %4, %473 : vector<16x256xi32>
    %cst_55 = arith.constant 0.000000e+00 : f32
    %475 = vector.broadcast %cst_55 : f32 to vector<16x256xf32>
    %476 = arith.select %474, %413, %475 : vector<16x256xi1>, vector<16x256xf32>
    %cst_56 = arith.constant dense<0.000000e+00> : vector<16xf32>
    %477 = vector.multi_reduction <add>, %476, %cst_56 [1] : vector<16x256xf32> to vector<16xf32>
    %478 = vector.shape_cast %477 : vector<16xf32> to vector<16x1xf32>
    %479 = vector.broadcast %478 : vector<16x1xf32> to vector<16x256xf32>
    %480 = arith.cmpf ogt, %413, %479 : vector<16x256xf32>
    %cst_57 = arith.constant 1.000000e+00 : f32
    %cst_58 = arith.constant 0.000000e+00 : f32
    %481 = vector.broadcast %cst_57 : f32 to vector<16x256xf32>
    %482 = vector.broadcast %cst_58 : f32 to vector<16x256xf32>
    %483 = arith.select %480, %481, %482 : vector<16x256xi1>, vector<16x256xf32>
    %cst_59 = arith.constant dense<0.000000e+00> : vector<16xf32>
    %484 = vector.multi_reduction <add>, %483, %cst_59 [1] : vector<16x256xf32> to vector<16xf32>
    %485 = vector.shape_cast %484 : vector<16xf32> to vector<16x1xf32>
    %cst_60 = arith.constant 2.500000e+01 : f32
    %486 = vector.broadcast %cst_60 : f32 to vector<16x1xf32>
    %487 = arith.cmpf olt, %485, %486 : vector<16x1xf32>
    %cst_61 = arith.constant 0x7F800000 : f32
    %488 = vector.broadcast %cst_61 : f32 to vector<16x1xf32>
    %489 = arith.select %487, %478, %488 : vector<16x1xi1>, vector<16x1xf32>
    %490 = arith.minimumf %471, %489 : vector<16x1xf32>
    %c64_i32 = arith.constant 64 : i32
    %491 = vector.broadcast %c64_i32 : i32 to vector<16x256xi32>
    %492 = arith.addi %5, %491 : vector<16x256xi32>
    %493 = arith.cmpi eq, %4, %492 : vector<16x256xi32>
    %cst_62 = arith.constant 0.000000e+00 : f32
    %494 = vector.broadcast %cst_62 : f32 to vector<16x256xf32>
    %495 = arith.select %493, %413, %494 : vector<16x256xi1>, vector<16x256xf32>
    %cst_63 = arith.constant dense<0.000000e+00> : vector<16xf32>
    %496 = vector.multi_reduction <add>, %495, %cst_63 [1] : vector<16x256xf32> to vector<16xf32>
    %497 = vector.shape_cast %496 : vector<16xf32> to vector<16x1xf32>
    %498 = vector.broadcast %497 : vector<16x1xf32> to vector<16x256xf32>
    %499 = arith.cmpf ogt, %413, %498 : vector<16x256xf32>
    %cst_64 = arith.constant 1.000000e+00 : f32
    %cst_65 = arith.constant 0.000000e+00 : f32
    %500 = vector.broadcast %cst_64 : f32 to vector<16x256xf32>
    %501 = vector.broadcast %cst_65 : f32 to vector<16x256xf32>
    %502 = arith.select %499, %500, %501 : vector<16x256xi1>, vector<16x256xf32>
    %cst_66 = arith.constant dense<0.000000e+00> : vector<16xf32>
    %503 = vector.multi_reduction <add>, %502, %cst_66 [1] : vector<16x256xf32> to vector<16xf32>
    %504 = vector.shape_cast %503 : vector<16xf32> to vector<16x1xf32>
    %cst_67 = arith.constant 2.500000e+01 : f32
    %505 = vector.broadcast %cst_67 : f32 to vector<16x1xf32>
    %506 = arith.cmpf olt, %504, %505 : vector<16x1xf32>
    %cst_68 = arith.constant 0x7F800000 : f32
    %507 = vector.broadcast %cst_68 : f32 to vector<16x1xf32>
    %508 = arith.select %506, %497, %507 : vector<16x1xi1>, vector<16x1xf32>
    %509 = arith.minimumf %490, %508 : vector<16x1xf32>
    %c80_i32 = arith.constant 80 : i32
    %510 = vector.broadcast %c80_i32 : i32 to vector<16x256xi32>
    %511 = arith.addi %5, %510 : vector<16x256xi32>
    %512 = arith.cmpi eq, %4, %511 : vector<16x256xi32>
    %cst_69 = arith.constant 0.000000e+00 : f32
    %513 = vector.broadcast %cst_69 : f32 to vector<16x256xf32>
    %514 = arith.select %512, %413, %513 : vector<16x256xi1>, vector<16x256xf32>
    %cst_70 = arith.constant dense<0.000000e+00> : vector<16xf32>
    %515 = vector.multi_reduction <add>, %514, %cst_70 [1] : vector<16x256xf32> to vector<16xf32>
    %516 = vector.shape_cast %515 : vector<16xf32> to vector<16x1xf32>
    %517 = vector.broadcast %516 : vector<16x1xf32> to vector<16x256xf32>
    %518 = arith.cmpf ogt, %413, %517 : vector<16x256xf32>
    %cst_71 = arith.constant 1.000000e+00 : f32
    %cst_72 = arith.constant 0.000000e+00 : f32
    %519 = vector.broadcast %cst_71 : f32 to vector<16x256xf32>
    %520 = vector.broadcast %cst_72 : f32 to vector<16x256xf32>
    %521 = arith.select %518, %519, %520 : vector<16x256xi1>, vector<16x256xf32>
    %cst_73 = arith.constant dense<0.000000e+00> : vector<16xf32>
    %522 = vector.multi_reduction <add>, %521, %cst_73 [1] : vector<16x256xf32> to vector<16xf32>
    %523 = vector.shape_cast %522 : vector<16xf32> to vector<16x1xf32>
    %cst_74 = arith.constant 2.500000e+01 : f32
    %524 = vector.broadcast %cst_74 : f32 to vector<16x1xf32>
    %525 = arith.cmpf olt, %523, %524 : vector<16x1xf32>
    %cst_75 = arith.constant 0x7F800000 : f32
    %526 = vector.broadcast %cst_75 : f32 to vector<16x1xf32>
    %527 = arith.select %525, %516, %526 : vector<16x1xi1>, vector<16x1xf32>
    %528 = arith.minimumf %509, %527 : vector<16x1xf32>
    %c96_i32 = arith.constant 96 : i32
    %529 = vector.broadcast %c96_i32 : i32 to vector<16x256xi32>
    %530 = arith.addi %5, %529 : vector<16x256xi32>
    %531 = arith.cmpi eq, %4, %530 : vector<16x256xi32>
    %cst_76 = arith.constant 0.000000e+00 : f32
    %532 = vector.broadcast %cst_76 : f32 to vector<16x256xf32>
    %533 = arith.select %531, %413, %532 : vector<16x256xi1>, vector<16x256xf32>
    %cst_77 = arith.constant dense<0.000000e+00> : vector<16xf32>
    %534 = vector.multi_reduction <add>, %533, %cst_77 [1] : vector<16x256xf32> to vector<16xf32>
    %535 = vector.shape_cast %534 : vector<16xf32> to vector<16x1xf32>
    %536 = vector.broadcast %535 : vector<16x1xf32> to vector<16x256xf32>
    %537 = arith.cmpf ogt, %413, %536 : vector<16x256xf32>
    %cst_78 = arith.constant 1.000000e+00 : f32
    %cst_79 = arith.constant 0.000000e+00 : f32
    %538 = vector.broadcast %cst_78 : f32 to vector<16x256xf32>
    %539 = vector.broadcast %cst_79 : f32 to vector<16x256xf32>
    %540 = arith.select %537, %538, %539 : vector<16x256xi1>, vector<16x256xf32>
    %cst_80 = arith.constant dense<0.000000e+00> : vector<16xf32>
    %541 = vector.multi_reduction <add>, %540, %cst_80 [1] : vector<16x256xf32> to vector<16xf32>
    %542 = vector.shape_cast %541 : vector<16xf32> to vector<16x1xf32>
    %cst_81 = arith.constant 2.500000e+01 : f32
    %543 = vector.broadcast %cst_81 : f32 to vector<16x1xf32>
    %544 = arith.cmpf olt, %542, %543 : vector<16x1xf32>
    %cst_82 = arith.constant 0x7F800000 : f32
    %545 = vector.broadcast %cst_82 : f32 to vector<16x1xf32>
    %546 = arith.select %544, %535, %545 : vector<16x1xi1>, vector<16x1xf32>
    %547 = arith.minimumf %528, %546 : vector<16x1xf32>
    %c112_i32 = arith.constant 112 : i32
    %548 = vector.broadcast %c112_i32 : i32 to vector<16x256xi32>
    %549 = arith.addi %5, %548 : vector<16x256xi32>
    %550 = arith.cmpi eq, %4, %549 : vector<16x256xi32>
    %cst_83 = arith.constant 0.000000e+00 : f32
    %551 = vector.broadcast %cst_83 : f32 to vector<16x256xf32>
    %552 = arith.select %550, %413, %551 : vector<16x256xi1>, vector<16x256xf32>
    %cst_84 = arith.constant dense<0.000000e+00> : vector<16xf32>
    %553 = vector.multi_reduction <add>, %552, %cst_84 [1] : vector<16x256xf32> to vector<16xf32>
    %554 = vector.shape_cast %553 : vector<16xf32> to vector<16x1xf32>
    %555 = vector.broadcast %554 : vector<16x1xf32> to vector<16x256xf32>
    %556 = arith.cmpf ogt, %413, %555 : vector<16x256xf32>
    %cst_85 = arith.constant 1.000000e+00 : f32
    %cst_86 = arith.constant 0.000000e+00 : f32
    %557 = vector.broadcast %cst_85 : f32 to vector<16x256xf32>
    %558 = vector.broadcast %cst_86 : f32 to vector<16x256xf32>
    %559 = arith.select %556, %557, %558 : vector<16x256xi1>, vector<16x256xf32>
    %cst_87 = arith.constant dense<0.000000e+00> : vector<16xf32>
    %560 = vector.multi_reduction <add>, %559, %cst_87 [1] : vector<16x256xf32> to vector<16xf32>
    %561 = vector.shape_cast %560 : vector<16xf32> to vector<16x1xf32>
    %cst_88 = arith.constant 2.500000e+01 : f32
    %562 = vector.broadcast %cst_88 : f32 to vector<16x1xf32>
    %563 = arith.cmpf olt, %561, %562 : vector<16x1xf32>
    %cst_89 = arith.constant 0x7F800000 : f32
    %564 = vector.broadcast %cst_89 : f32 to vector<16x1xf32>
    %565 = arith.select %563, %554, %564 : vector<16x1xi1>, vector<16x1xf32>
    %566 = arith.minimumf %547, %565 : vector<16x1xf32>
    %c128_i32 = arith.constant 128 : i32
    %567 = vector.broadcast %c128_i32 : i32 to vector<16x256xi32>
    %568 = arith.addi %5, %567 : vector<16x256xi32>
    %569 = arith.cmpi eq, %4, %568 : vector<16x256xi32>
    %cst_90 = arith.constant 0.000000e+00 : f32
    %570 = vector.broadcast %cst_90 : f32 to vector<16x256xf32>
    %571 = arith.select %569, %413, %570 : vector<16x256xi1>, vector<16x256xf32>
    %cst_91 = arith.constant dense<0.000000e+00> : vector<16xf32>
    %572 = vector.multi_reduction <add>, %571, %cst_91 [1] : vector<16x256xf32> to vector<16xf32>
    %573 = vector.shape_cast %572 : vector<16xf32> to vector<16x1xf32>
    %574 = vector.broadcast %573 : vector<16x1xf32> to vector<16x256xf32>
    %575 = arith.cmpf ogt, %413, %574 : vector<16x256xf32>
    %cst_92 = arith.constant 1.000000e+00 : f32
    %cst_93 = arith.constant 0.000000e+00 : f32
    %576 = vector.broadcast %cst_92 : f32 to vector<16x256xf32>
    %577 = vector.broadcast %cst_93 : f32 to vector<16x256xf32>
    %578 = arith.select %575, %576, %577 : vector<16x256xi1>, vector<16x256xf32>
    %cst_94 = arith.constant dense<0.000000e+00> : vector<16xf32>
    %579 = vector.multi_reduction <add>, %578, %cst_94 [1] : vector<16x256xf32> to vector<16xf32>
    %580 = vector.shape_cast %579 : vector<16xf32> to vector<16x1xf32>
    %cst_95 = arith.constant 2.500000e+01 : f32
    %581 = vector.broadcast %cst_95 : f32 to vector<16x1xf32>
    %582 = arith.cmpf olt, %580, %581 : vector<16x1xf32>
    %cst_96 = arith.constant 0x7F800000 : f32
    %583 = vector.broadcast %cst_96 : f32 to vector<16x1xf32>
    %584 = arith.select %582, %573, %583 : vector<16x1xi1>, vector<16x1xf32>
    %585 = arith.minimumf %566, %584 : vector<16x1xf32>
    %c144_i32 = arith.constant 144 : i32
    %586 = vector.broadcast %c144_i32 : i32 to vector<16x256xi32>
    %587 = arith.addi %5, %586 : vector<16x256xi32>
    %588 = arith.cmpi eq, %4, %587 : vector<16x256xi32>
    %cst_97 = arith.constant 0.000000e+00 : f32
    %589 = vector.broadcast %cst_97 : f32 to vector<16x256xf32>
    %590 = arith.select %588, %413, %589 : vector<16x256xi1>, vector<16x256xf32>
    %cst_98 = arith.constant dense<0.000000e+00> : vector<16xf32>
    %591 = vector.multi_reduction <add>, %590, %cst_98 [1] : vector<16x256xf32> to vector<16xf32>
    %592 = vector.shape_cast %591 : vector<16xf32> to vector<16x1xf32>
    %593 = vector.broadcast %592 : vector<16x1xf32> to vector<16x256xf32>
    %594 = arith.cmpf ogt, %413, %593 : vector<16x256xf32>
    %cst_99 = arith.constant 1.000000e+00 : f32
    %cst_100 = arith.constant 0.000000e+00 : f32
    %595 = vector.broadcast %cst_99 : f32 to vector<16x256xf32>
    %596 = vector.broadcast %cst_100 : f32 to vector<16x256xf32>
    %597 = arith.select %594, %595, %596 : vector<16x256xi1>, vector<16x256xf32>
    %cst_101 = arith.constant dense<0.000000e+00> : vector<16xf32>
    %598 = vector.multi_reduction <add>, %597, %cst_101 [1] : vector<16x256xf32> to vector<16xf32>
    %599 = vector.shape_cast %598 : vector<16xf32> to vector<16x1xf32>
    %cst_102 = arith.constant 2.500000e+01 : f32
    %600 = vector.broadcast %cst_102 : f32 to vector<16x1xf32>
    %601 = arith.cmpf olt, %599, %600 : vector<16x1xf32>
    %cst_103 = arith.constant 0x7F800000 : f32
    %602 = vector.broadcast %cst_103 : f32 to vector<16x1xf32>
    %603 = arith.select %601, %592, %602 : vector<16x1xi1>, vector<16x1xf32>
    %604 = arith.minimumf %585, %603 : vector<16x1xf32>
    %c160_i32 = arith.constant 160 : i32
    %605 = vector.broadcast %c160_i32 : i32 to vector<16x256xi32>
    %606 = arith.addi %5, %605 : vector<16x256xi32>
    %607 = arith.cmpi eq, %4, %606 : vector<16x256xi32>
    %cst_104 = arith.constant 0.000000e+00 : f32
    %608 = vector.broadcast %cst_104 : f32 to vector<16x256xf32>
    %609 = arith.select %607, %413, %608 : vector<16x256xi1>, vector<16x256xf32>
    %cst_105 = arith.constant dense<0.000000e+00> : vector<16xf32>
    %610 = vector.multi_reduction <add>, %609, %cst_105 [1] : vector<16x256xf32> to vector<16xf32>
    %611 = vector.shape_cast %610 : vector<16xf32> to vector<16x1xf32>
    %612 = vector.broadcast %611 : vector<16x1xf32> to vector<16x256xf32>
    %613 = arith.cmpf ogt, %413, %612 : vector<16x256xf32>
    %cst_106 = arith.constant 1.000000e+00 : f32
    %cst_107 = arith.constant 0.000000e+00 : f32
    %614 = vector.broadcast %cst_106 : f32 to vector<16x256xf32>
    %615 = vector.broadcast %cst_107 : f32 to vector<16x256xf32>
    %616 = arith.select %613, %614, %615 : vector<16x256xi1>, vector<16x256xf32>
    %cst_108 = arith.constant dense<0.000000e+00> : vector<16xf32>
    %617 = vector.multi_reduction <add>, %616, %cst_108 [1] : vector<16x256xf32> to vector<16xf32>
    %618 = vector.shape_cast %617 : vector<16xf32> to vector<16x1xf32>
    %cst_109 = arith.constant 2.500000e+01 : f32
    %619 = vector.broadcast %cst_109 : f32 to vector<16x1xf32>
    %620 = arith.cmpf olt, %618, %619 : vector<16x1xf32>
    %cst_110 = arith.constant 0x7F800000 : f32
    %621 = vector.broadcast %cst_110 : f32 to vector<16x1xf32>
    %622 = arith.select %620, %611, %621 : vector<16x1xi1>, vector<16x1xf32>
    %623 = arith.minimumf %604, %622 : vector<16x1xf32>
    %c176_i32 = arith.constant 176 : i32
    %624 = vector.broadcast %c176_i32 : i32 to vector<16x256xi32>
    %625 = arith.addi %5, %624 : vector<16x256xi32>
    %626 = arith.cmpi eq, %4, %625 : vector<16x256xi32>
    %cst_111 = arith.constant 0.000000e+00 : f32
    %627 = vector.broadcast %cst_111 : f32 to vector<16x256xf32>
    %628 = arith.select %626, %413, %627 : vector<16x256xi1>, vector<16x256xf32>
    %cst_112 = arith.constant dense<0.000000e+00> : vector<16xf32>
    %629 = vector.multi_reduction <add>, %628, %cst_112 [1] : vector<16x256xf32> to vector<16xf32>
    %630 = vector.shape_cast %629 : vector<16xf32> to vector<16x1xf32>
    %631 = vector.broadcast %630 : vector<16x1xf32> to vector<16x256xf32>
    %632 = arith.cmpf ogt, %413, %631 : vector<16x256xf32>
    %cst_113 = arith.constant 1.000000e+00 : f32
    %cst_114 = arith.constant 0.000000e+00 : f32
    %633 = vector.broadcast %cst_113 : f32 to vector<16x256xf32>
    %634 = vector.broadcast %cst_114 : f32 to vector<16x256xf32>
    %635 = arith.select %632, %633, %634 : vector<16x256xi1>, vector<16x256xf32>
    %cst_115 = arith.constant dense<0.000000e+00> : vector<16xf32>
    %636 = vector.multi_reduction <add>, %635, %cst_115 [1] : vector<16x256xf32> to vector<16xf32>
    %637 = vector.shape_cast %636 : vector<16xf32> to vector<16x1xf32>
    %cst_116 = arith.constant 2.500000e+01 : f32
    %638 = vector.broadcast %cst_116 : f32 to vector<16x1xf32>
    %639 = arith.cmpf olt, %637, %638 : vector<16x1xf32>
    %cst_117 = arith.constant 0x7F800000 : f32
    %640 = vector.broadcast %cst_117 : f32 to vector<16x1xf32>
    %641 = arith.select %639, %630, %640 : vector<16x1xi1>, vector<16x1xf32>
    %642 = arith.minimumf %623, %641 : vector<16x1xf32>
    %c192_i32 = arith.constant 192 : i32
    %643 = vector.broadcast %c192_i32 : i32 to vector<16x256xi32>
    %644 = arith.addi %5, %643 : vector<16x256xi32>
    %645 = arith.cmpi eq, %4, %644 : vector<16x256xi32>
    %cst_118 = arith.constant 0.000000e+00 : f32
    %646 = vector.broadcast %cst_118 : f32 to vector<16x256xf32>
    %647 = arith.select %645, %413, %646 : vector<16x256xi1>, vector<16x256xf32>
    %cst_119 = arith.constant dense<0.000000e+00> : vector<16xf32>
    %648 = vector.multi_reduction <add>, %647, %cst_119 [1] : vector<16x256xf32> to vector<16xf32>
    %649 = vector.shape_cast %648 : vector<16xf32> to vector<16x1xf32>
    %650 = vector.broadcast %649 : vector<16x1xf32> to vector<16x256xf32>
    %651 = arith.cmpf ogt, %413, %650 : vector<16x256xf32>
    %cst_120 = arith.constant 1.000000e+00 : f32
    %cst_121 = arith.constant 0.000000e+00 : f32
    %652 = vector.broadcast %cst_120 : f32 to vector<16x256xf32>
    %653 = vector.broadcast %cst_121 : f32 to vector<16x256xf32>
    %654 = arith.select %651, %652, %653 : vector<16x256xi1>, vector<16x256xf32>
    %cst_122 = arith.constant dense<0.000000e+00> : vector<16xf32>
    %655 = vector.multi_reduction <add>, %654, %cst_122 [1] : vector<16x256xf32> to vector<16xf32>
    %656 = vector.shape_cast %655 : vector<16xf32> to vector<16x1xf32>
    %cst_123 = arith.constant 2.500000e+01 : f32
    %657 = vector.broadcast %cst_123 : f32 to vector<16x1xf32>
    %658 = arith.cmpf olt, %656, %657 : vector<16x1xf32>
    %cst_124 = arith.constant 0x7F800000 : f32
    %659 = vector.broadcast %cst_124 : f32 to vector<16x1xf32>
    %660 = arith.select %658, %649, %659 : vector<16x1xi1>, vector<16x1xf32>
    %661 = arith.minimumf %642, %660 : vector<16x1xf32>
    %c208_i32 = arith.constant 208 : i32
    %662 = vector.broadcast %c208_i32 : i32 to vector<16x256xi32>
    %663 = arith.addi %5, %662 : vector<16x256xi32>
    %664 = arith.cmpi eq, %4, %663 : vector<16x256xi32>
    %cst_125 = arith.constant 0.000000e+00 : f32
    %665 = vector.broadcast %cst_125 : f32 to vector<16x256xf32>
    %666 = arith.select %664, %413, %665 : vector<16x256xi1>, vector<16x256xf32>
    %cst_126 = arith.constant dense<0.000000e+00> : vector<16xf32>
    %667 = vector.multi_reduction <add>, %666, %cst_126 [1] : vector<16x256xf32> to vector<16xf32>
    %668 = vector.shape_cast %667 : vector<16xf32> to vector<16x1xf32>
    %669 = vector.broadcast %668 : vector<16x1xf32> to vector<16x256xf32>
    %670 = arith.cmpf ogt, %413, %669 : vector<16x256xf32>
    %cst_127 = arith.constant 1.000000e+00 : f32
    %cst_128 = arith.constant 0.000000e+00 : f32
    %671 = vector.broadcast %cst_127 : f32 to vector<16x256xf32>
    %672 = vector.broadcast %cst_128 : f32 to vector<16x256xf32>
    %673 = arith.select %670, %671, %672 : vector<16x256xi1>, vector<16x256xf32>
    %cst_129 = arith.constant dense<0.000000e+00> : vector<16xf32>
    %674 = vector.multi_reduction <add>, %673, %cst_129 [1] : vector<16x256xf32> to vector<16xf32>
    %675 = vector.shape_cast %674 : vector<16xf32> to vector<16x1xf32>
    %cst_130 = arith.constant 2.500000e+01 : f32
    %676 = vector.broadcast %cst_130 : f32 to vector<16x1xf32>
    %677 = arith.cmpf olt, %675, %676 : vector<16x1xf32>
    %cst_131 = arith.constant 0x7F800000 : f32
    %678 = vector.broadcast %cst_131 : f32 to vector<16x1xf32>
    %679 = arith.select %677, %668, %678 : vector<16x1xi1>, vector<16x1xf32>
    %680 = arith.minimumf %661, %679 : vector<16x1xf32>
    %c224_i32 = arith.constant 224 : i32
    %681 = vector.broadcast %c224_i32 : i32 to vector<16x256xi32>
    %682 = arith.addi %5, %681 : vector<16x256xi32>
    %683 = arith.cmpi eq, %4, %682 : vector<16x256xi32>
    %cst_132 = arith.constant 0.000000e+00 : f32
    %684 = vector.broadcast %cst_132 : f32 to vector<16x256xf32>
    %685 = arith.select %683, %413, %684 : vector<16x256xi1>, vector<16x256xf32>
    %cst_133 = arith.constant dense<0.000000e+00> : vector<16xf32>
    %686 = vector.multi_reduction <add>, %685, %cst_133 [1] : vector<16x256xf32> to vector<16xf32>
    %687 = vector.shape_cast %686 : vector<16xf32> to vector<16x1xf32>
    %688 = vector.broadcast %687 : vector<16x1xf32> to vector<16x256xf32>
    %689 = arith.cmpf ogt, %413, %688 : vector<16x256xf32>
    %cst_134 = arith.constant 1.000000e+00 : f32
    %cst_135 = arith.constant 0.000000e+00 : f32
    %690 = vector.broadcast %cst_134 : f32 to vector<16x256xf32>
    %691 = vector.broadcast %cst_135 : f32 to vector<16x256xf32>
    %692 = arith.select %689, %690, %691 : vector<16x256xi1>, vector<16x256xf32>
    %cst_136 = arith.constant dense<0.000000e+00> : vector<16xf32>
    %693 = vector.multi_reduction <add>, %692, %cst_136 [1] : vector<16x256xf32> to vector<16xf32>
    %694 = vector.shape_cast %693 : vector<16xf32> to vector<16x1xf32>
    %cst_137 = arith.constant 2.500000e+01 : f32
    %695 = vector.broadcast %cst_137 : f32 to vector<16x1xf32>
    %696 = arith.cmpf olt, %694, %695 : vector<16x1xf32>
    %cst_138 = arith.constant 0x7F800000 : f32
    %697 = vector.broadcast %cst_138 : f32 to vector<16x1xf32>
    %698 = arith.select %696, %687, %697 : vector<16x1xi1>, vector<16x1xf32>
    %699 = arith.minimumf %680, %698 : vector<16x1xf32>
    %c240_i32 = arith.constant 240 : i32
    %700 = vector.broadcast %c240_i32 : i32 to vector<16x256xi32>
    %701 = arith.addi %5, %700 : vector<16x256xi32>
    %702 = arith.cmpi eq, %4, %701 : vector<16x256xi32>
    %cst_139 = arith.constant 0.000000e+00 : f32
    %703 = vector.broadcast %cst_139 : f32 to vector<16x256xf32>
    %704 = arith.select %702, %413, %703 : vector<16x256xi1>, vector<16x256xf32>
    %cst_140 = arith.constant dense<0.000000e+00> : vector<16xf32>
    %705 = vector.multi_reduction <add>, %704, %cst_140 [1] : vector<16x256xf32> to vector<16xf32>
    %706 = vector.shape_cast %705 : vector<16xf32> to vector<16x1xf32>
    %707 = vector.broadcast %706 : vector<16x1xf32> to vector<16x256xf32>
    %708 = arith.cmpf ogt, %413, %707 : vector<16x256xf32>
    %cst_141 = arith.constant 1.000000e+00 : f32
    %cst_142 = arith.constant 0.000000e+00 : f32
    %709 = vector.broadcast %cst_141 : f32 to vector<16x256xf32>
    %710 = vector.broadcast %cst_142 : f32 to vector<16x256xf32>
    %711 = arith.select %708, %709, %710 : vector<16x256xi1>, vector<16x256xf32>
    %cst_143 = arith.constant dense<0.000000e+00> : vector<16xf32>
    %712 = vector.multi_reduction <add>, %711, %cst_143 [1] : vector<16x256xf32> to vector<16xf32>
    %713 = vector.shape_cast %712 : vector<16xf32> to vector<16x1xf32>
    %cst_144 = arith.constant 2.500000e+01 : f32
    %714 = vector.broadcast %cst_144 : f32 to vector<16x1xf32>
    %715 = arith.cmpf olt, %713, %714 : vector<16x1xf32>
    %cst_145 = arith.constant 0x7F800000 : f32
    %716 = vector.broadcast %cst_145 : f32 to vector<16x1xf32>
    %717 = arith.select %715, %706, %716 : vector<16x1xi1>, vector<16x1xf32>
    %718 = arith.minimumf %699, %717 : vector<16x1xf32>
    %cst_146 = arith.constant dense<0x7F800000> : vector<1xf32>
    %719 = vector.multi_reduction <minimumf>, %718, %cst_146 [0] : vector<16x1xf32> to vector<1xf32>
    %720 = vector.shape_cast %719 : vector<1xf32> to vector<1x1xf32>
    %721 = vector.broadcast %720 : vector<1x1xf32> to vector<1x256xf32>
    %722 = arith.cmpf ogt, %411, %721 : vector<1x256xf32>
    %cst_147 = arith.constant 1.000000e+00 : f32
    %cst_148 = arith.constant 0.000000e+00 : f32
    %723 = vector.broadcast %cst_147 : f32 to vector<1x256xf32>
    %724 = vector.broadcast %cst_148 : f32 to vector<1x256xf32>
    %725 = arith.select %722, %723, %724 : vector<1x256xi1>, vector<1x256xf32>
    %cst_149 = arith.constant dense<0.000000e+00> : vector<1xf32>
    %726 = vector.multi_reduction <add>, %725, %cst_149 [1] : vector<1x256xf32> to vector<1xf32>
    %727 = vector.shape_cast %726 : vector<1xf32> to vector<1x1xf32>
    %cst_150 = arith.constant 0.000000e+00 : f32
    %728 = vector.broadcast %cst_150 : f32 to vector<1x256xf32>
    %729 = arith.select %722, %411, %728 : vector<1x256xi1>, vector<1x256xf32>
    %cst_151 = arith.constant dense<0.000000e+00> : vector<1xf32>
    %730 = vector.multi_reduction <add>, %729, %cst_151 [1] : vector<1x256xf32> to vector<1xf32>
    %731 = vector.shape_cast %730 : vector<1xf32> to vector<1x1xf32>
    %cst_152 = arith.constant 2.500000e+01 : f32
    %732 = vector.broadcast %cst_152 : f32 to vector<1x1xf32>
    %733 = arith.subf %732, %727 : vector<1x1xf32>
    %734 = arith.mulf %720, %733 : vector<1x1xf32>
    %735 = arith.addf %731, %734 : vector<1x1xf32>
    %cst_153 = arith.constant 4.000000e-02 : f32
    %736 = vector.broadcast %cst_153 : f32 to vector<1x1xf32>
    %737 = arith.mulf %735, %736 : vector<1x1xf32>
    %c0_154 = arith.constant 0 : index
    %c0_155 = arith.constant 0 : index
    %c0_156 = arith.constant 0 : index
    %738 = vector.load %arg6[%c0_154, %c0_155, %c0_156] : memref<1x1x1xf32, #tpu.memory_space<vmem>>, vector<1x1x1xf32>
    %739 = vector.shape_cast %738 : vector<1x1x1xf32> to vector<1x1xf32>
    %740 = vector.shape_cast %737 : vector<1x1xf32> to vector<1x1x1xf32>
    tpu.vector_store %arg6[%c0_154, %c0_155, %c0_156], %740 {strides = array<i32>} : memref<1x1x1xf32, #tpu.memory_space<vmem>>, vector<1x1x1xf32>,
    return
  }
  func.func @transform_0(%arg0: i32) -> (i32, i32, i32) {
    %c0_i32 = arith.constant 0 : i32
    %c0_i32_0 = arith.constant 0 : i32
    %c0_i32_1 = arith.constant 0 : i32
    return %arg0, %c0_i32, %c0_i32_0 : i32, i32, i32
  }
  func.func @transform_1(%arg0: i32) -> (i32, i32) {
    %c0_i32 = arith.constant 0 : i32
    %c0_i32_0 = arith.constant 0 : i32
    %c0_i32_1 = arith.constant 0 : i32
    return %c0_i32, %c0_i32_0 : i32, i32
  }
  func.func @transform_2(%arg0: i32) -> (i32, i32) {
    %c0_i32 = arith.constant 0 : i32
    %c0_i32_0 = arith.constant 0 : i32
    %c0_i32_1 = arith.constant 0 : i32
    return %c0_i32, %c0_i32_0 : i32, i32
  }
  func.func @transform_3(%arg0: i32) -> (i32, i32) {
    %c0_i32 = arith.constant 0 : i32
    %c0_i32_0 = arith.constant 0 : i32
    %c0_i32_1 = arith.constant 0 : i32
    return %c0_i32, %c0_i32_0 : i32, i32
  }
  func.func @transform_4(%arg0: i32) -> (i32, i32) {
    %c0_i32 = arith.constant 0 : i32
    %c0_i32_0 = arith.constant 0 : i32
    %c0_i32_1 = arith.constant 0 : i32
    return %c0_i32, %c0_i32_0 : i32, i32
  }
  func.func @transform_5(%arg0: i32) -> (i32, i32, i32) {
    %c0_i32 = arith.constant 0 : i32
    %c0_i32_0 = arith.constant 0 : i32
    %c0_i32_1 = arith.constant 0 : i32
    return %arg0, %c0_i32, %c0_i32_0 : i32, i32, i32
  }
}

</mosaic_0001>

<llo_original>
// kernel: tpu_custom_call.1
$region0: #{tpu_custom_call.1}
  #allocation0 [shape = 'u32[]', space=smem, size = 0x4, offset = 0x4, fixed_abs, tag = 'smem constant byte address 0x4 - core index']
  #allocation1 [shape = 'u32[72,128]{1,0:T(1,128)}', space=vmem, size = 0x9000, scoped, tag = 'internal scratch']
  #allocation2 [shape = 'f32[1,1]{1,0:T(1,128)S(1)}', space=vmem, size = 0x200, scoped, tag = 'scoped memory for tpu_custom_call.1']
  %s0 = inlined_call_operand.vmem [shape: f32[2,4,256], index: 0, kind: input, shape index: {}]
  %s1 = inlined_call_operand.vmem [shape: f32[128,4], index: 1, kind: input, shape index: {}]
  %s2 = inlined_call_operand.vmem [shape: f32[128,1], index: 2, kind: input, shape index: {}]
  %s3 = inlined_call_operand.vmem [shape: f32[128,1], index: 3, kind: input, shape index: {}]
  %s4 = inlined_call_operand.<no memory space> [shape: f32[1,1], index: 4, kind: input, shape index: {}]
  %s5 = inlined_call_operand.vmem [shape: f32[2,1,1], index: 5, kind: output, shape index: {}]
  %s6 = sld [smem:[#allocation0]]
  $region53: #{tpu_custom_call.1} parent=0
    _
  %s8 = ssub.s32 1, %s6
  %s9 = scalar_select 0, %s8, %s6
  %v10 = vstv %s4
  %11 = vst [vmem:[#allocation2] sm:$0x1] %v10
  loop: start=0, step=1, limit=4
  $region2: #{tpu_custom_call.1} parent=0 // loop_pre_header
    _
  $region3: #{tpu_custom_call.1} parent=0 // loop_header
    %s13 = sphi 0, %s17
    %p14 = scmp.ge.s32.totalorder %s13, 4
    %s23 = sphi 0, %s25
    %s26 = sphi 0, %s23
    %s27 = sphi 0, %s26
    %s43 = sphi 0, %s27
    %s47 = sphi 0, %s47
    %s49 = sphi 0, %s47
    %s50 = sphi 0, %s49
    %s64 = sphi 0, %s50
    %s68 = sphi 0, %s68
    %s70 = sphi 0, %s68
    %s71 = sphi 0, %s70
    %s85 = sphi 0, %s71
    %s89 = sphi 0, %s89
    %s91 = sphi 0, %s89
    %s92 = sphi 0, %s91
    %s106 = sphi 0, %s92
    %s110 = sphi 0, %s110
    %s112 = sphi 0, %s110
    %s113 = sphi 0, %s112
    %s127 = sphi 0, %s113
    %s133 = sphi 0, %s135
    %s136 = sphi 0, %s133
    %s137 = sphi 0, %s136
    %s153 = sphi 0, %s137
  $region4: #{tpu_custom_call.1} parent=0 // loop_header_branch
    %16 = sbr.rel (%p14) target = $region8
  $region5: #{tpu_custom_call.1} parent=0 // loop_body
    %s18 = ssub.s32 %s13, 1
    %s19 = ssub.s32 %s13, 2
    %s20 = sadd.s32 %s13, 1
    %s21 = ssub.s32 %s13, %s20
    %p22 = scmp.eq.s32.totalorder %s21, 0
    %s24 = sadd.s32 %s23, 1
    %s25 = scalar_select %p22, %s23, %s24
    %p28 = pneg %p22
    %p29 = scmp.eq.s32.totalorder %s13, 1
    %p30 = por %p28, %p29
    %p31 = scmp.ne.s32.totalorder %s23, %s26
    %p32 = scmp.eq.s32.totalorder %s13, 0
    %p33 = por %p31, %p32
    %p34 = scmp.ne.s32.totalorder %s23, %s26
    %p35 = scmp.eq.s32.totalorder %s18, 1
    %p36 = por %p34, %p35
    %p37 = scmp.ne.s32.totalorder %s26, %s27
    %p38 = scmp.eq.s32.totalorder %s18, 0
    %p39 = por %p37, %p38
    %p40 = scmp.ne.s32.totalorder %s26, %s27
    %p41 = scmp.eq.s32.totalorder %s19, 1
    %p42 = por %p40, %p41
    %p44 = scmp.ne.s32.totalorder %s27, %s43
    %p45 = scmp.eq.s32.totalorder %s19, 0
    %p46 = por %p44, %p45
    %s48 = sadd.s32 %s47, 1
    %p51 = scmp.eq.s32.totalorder %s13, 1
    %p52 = scmp.ne.s32.totalorder %s47, %s49
    %p53 = scmp.eq.s32.totalorder %s13, 0
    %p54 = por %p52, %p53
    %p55 = scmp.ne.s32.totalorder %s47, %s49
    %p56 = scmp.eq.s32.totalorder %s18, 1
    %p57 = por %p55, %p56
    %p58 = scmp.ne.s32.totalorder %s49, %s50
    %p59 = scmp.eq.s32.totalorder %s18, 0
    %p60 = por %p58, %p59
    %p61 = scmp.ne.s32.totalorder %s49, %s50
    %p62 = scmp.eq.s32.totalorder %s19, 1
    %p63 = por %p61, %p62
    %p65 = scmp.ne.s32.totalorder %s50, %s64
    %p66 = scmp.eq.s32.totalorder %s19, 0
    %p67 = por %p65, %p66
    %s69 = sadd.s32 %s68, 1
    %p72 = scmp.eq.s32.totalorder %s13, 1
    %p73 = scmp.ne.s32.totalorder %s68, %s70
    %p74 = scmp.eq.s32.totalorder %s13, 0
    %p75 = por %p73, %p74
    %p76 = scmp.ne.s32.totalorder %s68, %s70
    %p77 = scmp.eq.s32.totalorder %s18, 1
    %p78 = por %p76, %p77
    %p79 = scmp.ne.s32.totalorder %s70, %s71
    %p80 = scmp.eq.s32.totalorder %s18, 0
    %p81 = por %p79, %p80
    %p82 = scmp.ne.s32.totalorder %s70, %s71
    %p83 = scmp.eq.s32.totalorder %s19, 1
    %p84 = por %p82, %p83
    %p86 = scmp.ne.s32.totalorder %s71, %s85
    %p87 = scmp.eq.s32.totalorder %s19, 0
    %p88 = por %p86, %p87
    %s90 = sadd.s32 %s89, 1
    %p93 = scmp.eq.s32.totalorder %s13, 1
    %p94 = scmp.ne.s32.totalorder %s89, %s91
    %p95 = scmp.eq.s32.totalorder %s13, 0
    %p96 = por %p94, %p95
    %p97 = scmp.ne.s32.totalorder %s89, %s91
    %p98 = scmp.eq.s32.totalorder %s18, 1
    %p99 = por %p97, %p98
    %p100 = scmp.ne.s32.totalorder %s91, %s92
    %p101 = scmp.eq.s32.totalorder %s18, 0
    %p102 = por %p100, %p101
    %p103 = scmp.ne.s32.totalorder %s91, %s92
    %p104 = scmp.eq.s32.totalorder %s19, 1
    %p105 = por %p103, %p104
    %p107 = scmp.ne.s32.totalorder %s92, %s106
    %p108 = scmp.eq.s32.totalorder %s19, 0
    %p109 = por %p107, %p108
    %s111 = sadd.s32 %s110, 1
    %p114 = scmp.eq.s32.totalorder %s13, 1
    %p115 = scmp.ne.s32.totalorder %s110, %s112
    %p116 = scmp.eq.s32.totalorder %s13, 0
    %p117 = por %p115, %p116
    %p118 = scmp.ne.s32.totalorder %s110, %s112
    %p119 = scmp.eq.s32.totalorder %s18, 1
    %p120 = por %p118, %p119
    %p121 = scmp.ne.s32.totalorder %s112, %s113
    %p122 = scmp.eq.s32.totalorder %s18, 0
    %p123 = por %p121, %p122
    %p124 = scmp.ne.s32.totalorder %s112, %s113
    %p125 = scmp.eq.s32.totalorder %s19, 1
    %p126 = por %p124, %p125
    %p128 = scmp.ne.s32.totalorder %s113, %s127
    %p129 = scmp.eq.s32.totalorder %s19, 0
    %p130 = por %p128, %p129
    %s131 = ssub.s32 %s13, %s20
    %p132 = scmp.eq.s32.totalorder %s131, 0
    %s134 = sadd.s32 %s133, 1
    %s135 = scalar_select %p132, %s133, %s134
    %p138 = pneg %p132
    %p139 = scmp.eq.s32.totalorder %s13, 1
    %p140 = por %p138, %p139
    %p141 = scmp.ne.s32.totalorder %s133, %s136
    %p142 = scmp.eq.s32.totalorder %s13, 0
    %p143 = por %p141, %p142
    %p144 = scmp.ne.s32.totalorder %s133, %s136
    %p145 = scmp.eq.s32.totalorder %s18, 1
    %p146 = por %p144, %p145
    %p147 = scmp.ne.s32.totalorder %s136, %s137
    %p148 = scmp.eq.s32.totalorder %s18, 0
    %p149 = por %p147, %p148
    %p150 = scmp.ne.s32.totalorder %s136, %s137
    %p151 = scmp.eq.s32.totalorder %s19, 1
    %p152 = por %p150, %p151
    %p154 = scmp.ne.s32.totalorder %s137, %s153
    %p155 = scmp.eq.s32.totalorder %s19, 0
    %p156 = por %p154, %p155
    %p157 = scmp.le.s32.totalorder 1, %s13
    %p158 = scmp.lt.s32.totalorder %s13, 3
    %p159 = pnand %p157, %p158
    %p160 = pneg %p159
    // Predicated region
    $region9: #{tpu_custom_call.1} parent=5 // pred_check
      _
    $region10: #{tpu_custom_call.1} parent=5 // pred_check_branch
      %162 = sbr.rel (%p159) target = $region12
    $region11: #{tpu_custom_call.1} parent=5 // pred_region
      %s163 = ssub.s32 %s13, 1
      // Predicated region
      $region13: #{tpu_custom_call.1} parent=11 // pred_check
        %p164 = pneg %p60
      $region14: #{tpu_custom_call.1} parent=11 // pred_check_branch
        %166 = sbr.rel (%p164) target = $region16
      $region15: #{tpu_custom_call.1} parent=11 // pred_region
        _
      $region16: #{tpu_custom_call.1} parent=11 // pred_fallthru
        _
      // Predicated region
      $region17: #{tpu_custom_call.1} parent=11 // pred_check
        %p167 = pneg %p81
      $region18: #{tpu_custom_call.1} parent=11 // pred_check_branch
        %169 = sbr.rel (%p167) target = $region20
      $region19: #{tpu_custom_call.1} parent=11 // pred_region
        _
      $region20: #{tpu_custom_call.1} parent=11 // pred_fallthru
        _
      // Predicated region
      $region21: #{tpu_custom_call.1} parent=11 // pred_check
        %p170 = pneg %p102
      $region22: #{tpu_custom_call.1} parent=11 // pred_check_branch
        %172 = sbr.rel (%p170) target = $region24
      $region23: #{tpu_custom_call.1} parent=11 // pred_region
        _
      $region24: #{tpu_custom_call.1} parent=11 // pred_fallthru
        _
      // Predicated region
      $region25: #{tpu_custom_call.1} parent=11 // pred_check
        %p173 = pneg %p123
      $region26: #{tpu_custom_call.1} parent=11 // pred_check_branch
        %175 = sbr.rel (%p173) target = $region28
      $region27: #{tpu_custom_call.1} parent=11 // pred_region
        _
      $region28: #{tpu_custom_call.1} parent=11 // pred_fallthru
        _
    $region12: #{tpu_custom_call.1} parent=5 // pred_fallthru
      _
    %p176 = scmp.lt.s32.totalorder %s13, 2
    // Predicated region
    $region29: #{tpu_custom_call.1} parent=5 // pred_check
      %p177 = pneg %p176
    $region30: #{tpu_custom_call.1} parent=5 // pred_check_branch
      %179 = sbr.rel (%p177) target = $region32
    $region31: #{tpu_custom_call.1} parent=5 // pred_region
      // Predicated region
      $region33: #{tpu_custom_call.1} parent=31 // pred_check
        %p180 = pneg %p33
      $region34: #{tpu_custom_call.1} parent=31 // pred_check_branch
        %182 = sbr.rel (%p180) target = $region36
      $region35: #{tpu_custom_call.1} parent=31 // pred_region
        %p183 = scmp.lt.s32.totalorder %s13, 1
        %s184 = scalar_select %p183, %s13, 1
        %s185 = smul.addr %s184, 2
        %s186 = smul.addr %s185, 4
        %s187 = scalar_lea.vmem %s0, %s186
      $region36: #{tpu_custom_call.1} parent=31 // pred_fallthru
        _
    $region32: #{tpu_custom_call.1} parent=5 // pred_fallthru
      _
    %p188 = scmp.le.s32.totalorder 1, %s13
    %p189 = scmp.lt.s32.totalorder %s13, 3
    %p190 = pnand %p188, %p189
    %p191 = pneg %p190
    // Predicated region
    $region37: #{tpu_custom_call.1} parent=5 // pred_check
      _
    $region38: #{tpu_custom_call.1} parent=5 // pred_check_branch
      %193 = sbr.rel (%p190) target = $region40
    $region39: #{tpu_custom_call.1} parent=5 // pred_region
      %s194 = ssub.s32 %s13, 1
      %p195 = scmp.lt.s32.totalorder %s18, 1
      %s196 = scalar_select %p195, %s18, 1
      %s197 = smul.addr %s196, 2
      %s198 = smul.addr %s197, 4
      %s199 = scalar_lea.vmem %s0, %s198
      %p200 = pneg %p39
      %p201 = pneg %p36
      %p202 = pneg %p60
      %p203 = pneg %p57
      %p204 = pneg %p81
      %p205 = pneg %p78
      %p206 = pneg %p102
      %p207 = pneg %p99
      %p208 = pneg %p123
      %p209 = pneg %p120
      %p210 = pneg %p149
      %p211 = pneg %p146
      %p212 = scmp.lt.s32.totalorder %s18, 1
      %s213 = scalar_select %p212, %s18, 1
      %s214 = scalar_lea.vmem %s5, %s213
      %p215 = scmp.lt.s32.totalorder %s18, 1
      %s216 = scalar_select %p215, %s18, 1
      %s217 = smul.addr %s216, 2
      %s218 = smul.addr %s217, 4
      %s219 = scalar_lea.vmem %s0, %s218
      %p220 = scmp.lt.s32.totalorder %s18, 1
      %s221 = scalar_select %p220, %s18, 1
      %s222 = scalar_lea.vmem %s5, %s221
      %v223 = vld [vmem:[%s1] sm:$0xff]
      %v224 = vld [vmem:[%s1 + $0x8] sm:$0xff]
      %v225 = vld [vmem:[%s1 + $0x10] sm:$0xff]
      %v226 = vld [vmem:[%s1 + $0x18] sm:$0xff]
      %v227 = vld [vmem:[%s1 + $0x20] sm:$0xff]
      %v228 = vld [vmem:[%s1 + $0x28] sm:$0xff]
      %v229 = vld [vmem:[%s1 + $0x30] sm:$0xff]
      %v230 = vld [vmem:[%s1 + $0x38] sm:$0xff]
      %v231 = vld [vmem:[%s1 + $0x40] sm:$0xff]
      %v232 = vld [vmem:[%s1 + $0x48] sm:$0xff]
      %v233 = vld [vmem:[%s1 + $0x50] sm:$0xff]
      %v234 = vld [vmem:[%s1 + $0x58] sm:$0xff]
      %v235 = vld [vmem:[%s1 + $0x60] sm:$0xff]
      %v236 = vld [vmem:[%s1 + $0x68] sm:$0xff]
      %v237 = vld [vmem:[%s1 + $0x70] sm:$0xff]
      %v238 = vld [vmem:[%s1 + $0x78] sm:$0xff]
      %v239 = vld [vmem:[%s2] sm:$0xff]
      %v240 = vld [vmem:[%s2 + $0x8] sm:$0xff]
      %v241 = vld [vmem:[%s2 + $0x10] sm:$0xff]
      %v242 = vld [vmem:[%s2 + $0x18] sm:$0xff]
      %v243 = vld [vmem:[%s2 + $0x20] sm:$0xff]
      %v244 = vld [vmem:[%s2 + $0x28] sm:$0xff]
      %v245 = vld [vmem:[%s2 + $0x30] sm:$0xff]
      %v246 = vld [vmem:[%s2 + $0x38] sm:$0xff]
      %v247 = vld [vmem:[%s2 + $0x40] sm:$0xff]
      %v248 = vld [vmem:[%s2 + $0x48] sm:$0xff]
      %v249 = vld [vmem:[%s2 + $0x50] sm:$0xff]
      %v250 = vld [vmem:[%s2 + $0x58] sm:$0xff]
      %v251 = vld [vmem:[%s2 + $0x60] sm:$0xff]
      %v252 = vld [vmem:[%s2 + $0x68] sm:$0xff]
      %v253 = vld [vmem:[%s2 + $0x70] sm:$0xff]
      %v254 = vld [vmem:[%s2 + $0x78] sm:$0xff]
      %v255 = vld [vmem:[%s3] sm:$0xff]
      %v256 = vld [vmem:[%s3 + $0x8] sm:$0xff]
      %v257 = vld [vmem:[%s3 + $0x10] sm:$0xff]
      %v258 = vld [vmem:[%s3 + $0x18] sm:$0xff]
      %v259 = vld [vmem:[%s3 + $0x20] sm:$0xff]
      %v260 = vld [vmem:[%s3 + $0x28] sm:$0xff]
      %v261 = vld [vmem:[%s3 + $0x30] sm:$0xff]
      %v262 = vld [vmem:[%s3 + $0x38] sm:$0xff]
      %v263 = vld [vmem:[%s3 + $0x40] sm:$0xff]
      %v264 = vld [vmem:[%s3 + $0x48] sm:$0xff]
      %v265 = vld [vmem:[%s3 + $0x50] sm:$0xff]
      %v266 = vld [vmem:[%s3 + $0x58] sm:$0xff]
      %v267 = vld [vmem:[%s3 + $0x60] sm:$0xff]
      %v268 = vld [vmem:[%s3 + $0x68] sm:$0xff]
      %v269 = vld [vmem:[%s3 + $0x70] sm:$0xff]
      %v270 = vld [vmem:[%s3 + $0x78] sm:$0xff]
      %v271 = vld [vmem:[#allocation2] sm:$0x1]
      %v272 = vlaneseq
      %v273 = vand.u32 %v272, 127
      %v274 = vadd.s32 %v273, 128
      %v275 = vlaneseq
      %v276 = vshrl.u32 %v275, 7
      %v277 = vadd.s32 %v276, 8
      %v278 = vld [vmem:[%s219] ss:$4 sm:$0x3]
      %v280 = vperm.slane %v278, 0
      %v281 = vperm.slane %v278, 1
      %s284 = scalar_lea.vmem %s219, 1
      %v285 = vld [vmem:[%s284] ss:$4 sm:$0x3]
      %v287 = vperm.slane %v285, 0
      %v288 = vperm.slane %v285, 1
      %s291 = scalar_lea.vmem %s219, 2
      %v292 = vld [vmem:[%s291] ss:$4 sm:$0x3]
      %v294 = vperm.slane %v292, 0
      %v295 = vperm.slane %v292, 1
      %s298 = scalar_lea.vmem %s219, 3
      %v299 = vld [vmem:[%s298] ss:$4 sm:$0x3]
      %v301 = vperm.slane %v299, 0
      %v302 = vperm.slane %v299, 1
      %306 = vset.pattern.permute.xlu0 0
      %307 = vperm.xlu0 %306, %v223
      %v308 = vpop.permute.xlu0 %307
      %v310 = vmul.f32 %v308, %v280
      %v311 = vmul.f32 %v308, %v281
      %313 = vset.pattern.permute.xlu0 0
      %314 = vperm.xlu0 %313, %v239
      %v315 = vpop.permute.xlu0 %314
      %v317 = vadd.f32 %v315, %v310
      %v318 = vadd.f32 %v315, %v311
      %319 = vset.pattern.permute.xlu0 1
      %320 = vperm.xlu0 %319, %v223
      %v321 = vpop.permute.xlu0 %320
      %v323 = vmul.f32 %v321, %v287
      %v324 = vmul.f32 %v321, %v288
      %v325 = vadd.f32 %v317, %v323
      %v326 = vadd.f32 %v318, %v324
      %327 = vset.pattern.permute.xlu0 2
      %328 = vperm.xlu0 %327, %v223
      %v329 = vpop.permute.xlu0 %328
      %v331 = vmul.f32 %v329, %v294
      %v332 = vmul.f32 %v329, %v295
      %v333 = vadd.f32 %v325, %v331
      %v334 = vadd.f32 %v326, %v332
      %335 = vset.pattern.permute.xlu0 3
      %336 = vperm.xlu0 %335, %v223
      %v337 = vpop.permute.xlu0 %336
      %v339 = vmul.f32 %v337, %v301
      %v340 = vmul.f32 %v337, %v302
      %v341 = vadd.f32 %v333, %v339
      %v342 = vadd.f32 %v334, %v340
      %v343 = vmax.f32 %v341, 0.0
      %v344 = vmax.f32 %v342, 0.0
      %346 = vset.pattern.permute.xlu0 0
      %347 = vperm.xlu0 %346, %v255
      %v348 = vpop.permute.xlu0 %347
      %v350 = vmul.f32 %v343, %v348
      %v351 = vmul.f32 %v344, %v348
      %v352 = vadd.f32 %v350, 0.0
      %v353 = vadd.f32 %v351, 0.0
      %355 = vset.pattern.permute.xlu0 0
      %356 = vperm.xlu0 %355, %v224
      %v357 = vpop.permute.xlu0 %356
      %v359 = vmul.f32 %v357, %v280
      %v360 = vmul.f32 %v357, %v281
      %362 = vset.pattern.permute.xlu0 0
      %363 = vperm.xlu0 %362, %v240
      %v364 = vpop.permute.xlu0 %363
      %v366 = vadd.f32 %v364, %v359
      %v367 = vadd.f32 %v364, %v360
      %368 = vset.pattern.permute.xlu0 1
      %369 = vperm.xlu0 %368, %v224
      %v370 = vpop.permute.xlu0 %369
      %v372 = vmul.f32 %v370, %v287
      %v373 = vmul.f32 %v370, %v288
      %v374 = vadd.f32 %v366, %v372
      %v375 = vadd.f32 %v367, %v373
      %376 = vset.pattern.permute.xlu0 2
      %377 = vperm.xlu0 %376, %v224
      %v378 = vpop.permute.xlu0 %377
      %v380 = vmul.f32 %v378, %v294
      %v381 = vmul.f32 %v378, %v295
      %v382 = vadd.f32 %v374, %v380
      %v383 = vadd.f32 %v375, %v381
      %384 = vset.pattern.permute.xlu0 3
      %385 = vperm.xlu0 %384, %v224
      %v386 = vpop.permute.xlu0 %385
      %v388 = vmul.f32 %v386, %v301
      %v389 = vmul.f32 %v386, %v302
      %v390 = vadd.f32 %v382, %v388
      %v391 = vadd.f32 %v383, %v389
      %v392 = vmax.f32 %v390, 0.0
      %v393 = vmax.f32 %v391, 0.0
      %395 = vset.pattern.permute.xlu0 0
      %396 = vperm.xlu0 %395, %v256
      %v397 = vpop.permute.xlu0 %396
      %v399 = vmul.f32 %v392, %v397
      %v400 = vmul.f32 %v393, %v397
      %v401 = vadd.f32 %v352, %v399
      %v402 = vadd.f32 %v353, %v400
      %404 = vset.pattern.permute.xlu0 0
      %405 = vperm.xlu0 %404, %v225
      %v406 = vpop.permute.xlu0 %405
      %v408 = vmul.f32 %v406, %v280
      %v409 = vmul.f32 %v406, %v281
      %411 = vset.pattern.permute.xlu0 0
      %412 = vperm.xlu0 %411, %v241
      %v413 = vpop.permute.xlu0 %412
      %v415 = vadd.f32 %v413, %v408
      %v416 = vadd.f32 %v413, %v409
      %417 = vset.pattern.permute.xlu0 1
      %418 = vperm.xlu0 %417, %v225
      %v419 = vpop.permute.xlu0 %418
      %v421 = vmul.f32 %v419, %v287
      %v422 = vmul.f32 %v419, %v288
      %v423 = vadd.f32 %v415, %v421
      %v424 = vadd.f32 %v416, %v422
      %425 = vset.pattern.permute.xlu0 2
      %426 = vperm.xlu0 %425, %v225
      %v427 = vpop.permute.xlu0 %426
      %v429 = vmul.f32 %v427, %v294
      %v430 = vmul.f32 %v427, %v295
      %v431 = vadd.f32 %v423, %v429
      %v432 = vadd.f32 %v424, %v430
      %433 = vset.pattern.permute.xlu0 3
      %434 = vperm.xlu0 %433, %v225
      %v435 = vpop.permute.xlu0 %434
      %v437 = vmul.f32 %v435, %v301
      %v438 = vmul.f32 %v435, %v302
      %v439 = vadd.f32 %v431, %v437
      %v440 = vadd.f32 %v432, %v438
      %v441 = vmax.f32 %v439, 0.0
      %v442 = vmax.f32 %v440, 0.0
      %444 = vset.pattern.permute.xlu0 0
      %445 = vperm.xlu0 %444, %v257
      %v446 = vpop.permute.xlu0 %445
      %v448 = vmul.f32 %v441, %v446
      %v449 = vmul.f32 %v442, %v446
      %v450 = vadd.f32 %v401, %v448
      %v451 = vadd.f32 %v402, %v449
      %453 = vset.pattern.permute.xlu0 0
      %454 = vperm.xlu0 %453, %v226
      %v455 = vpop.permute.xlu0 %454
      %v457 = vmul.f32 %v455, %v280
      %v458 = vmul.f32 %v455, %v281
      %460 = vset.pattern.permute.xlu0 0
      %461 = vperm.xlu0 %460, %v242
      %v462 = vpop.permute.xlu0 %461
      %v464 = vadd.f32 %v462, %v457
      %v465 = vadd.f32 %v462, %v458
      %466 = vset.pattern.permute.xlu0 1
      %467 = vperm.xlu0 %466, %v226
      %v468 = vpop.permute.xlu0 %467
      %v470 = vmul.f32 %v468, %v287
      %v471 = vmul.f32 %v468, %v288
      %v472 = vadd.f32 %v464, %v470
      %v473 = vadd.f32 %v465, %v471
      %474 = vset.pattern.permute.xlu0 2
      %475 = vperm.xlu0 %474, %v226
      %v476 = vpop.permute.xlu0 %475
      %v478 = vmul.f32 %v476, %v294
      %v479 = vmul.f32 %v476, %v295
      %v480 = vadd.f32 %v472, %v478
      %v481 = vadd.f32 %v473, %v479
      %482 = vset.pattern.permute.xlu0 3
      %483 = vperm.xlu0 %482, %v226
      %v484 = vpop.permute.xlu0 %483
      %v486 = vmul.f32 %v484, %v301
      %v487 = vmul.f32 %v484, %v302
      %v488 = vadd.f32 %v480, %v486
      %v489 = vadd.f32 %v481, %v487
      %v490 = vmax.f32 %v488, 0.0
      %v491 = vmax.f32 %v489, 0.0
      %493 = vset.pattern.permute.xlu0 0
      %494 = vperm.xlu0 %493, %v258
      %v495 = vpop.permute.xlu0 %494
      %v497 = vmul.f32 %v490, %v495
      %v498 = vmul.f32 %v491, %v495
      %v499 = vadd.f32 %v450, %v497
      %v500 = vadd.f32 %v451, %v498
      %502 = vset.pattern.permute.xlu0 0
      %503 = vperm.xlu0 %502, %v227
      %v504 = vpop.permute.xlu0 %503
      %v506 = vmul.f32 %v504, %v280
      %v507 = vmul.f32 %v504, %v281
      %509 = vset.pattern.permute.xlu0 0
      %510 = vperm.xlu0 %509, %v243
      %v511 = vpop.permute.xlu0 %510
      %v513 = vadd.f32 %v511, %v506
      %v514 = vadd.f32 %v511, %v507
      %515 = vset.pattern.permute.xlu0 1
      %516 = vperm.xlu0 %515, %v227
      %v517 = vpop.permute.xlu0 %516
      %v519 = vmul.f32 %v517, %v287
      %v520 = vmul.f32 %v517, %v288
      %v521 = vadd.f32 %v513, %v519
      %v522 = vadd.f32 %v514, %v520
      %523 = vset.pattern.permute.xlu0 2
      %524 = vperm.xlu0 %523, %v227
      %v525 = vpop.permute.xlu0 %524
      %v527 = vmul.f32 %v525, %v294
      %v528 = vmul.f32 %v525, %v295
      %v529 = vadd.f32 %v521, %v527
      %v530 = vadd.f32 %v522, %v528
      %531 = vset.pattern.permute.xlu0 3
      %532 = vperm.xlu0 %531, %v227
      %v533 = vpop.permute.xlu0 %532
      %v535 = vmul.f32 %v533, %v301
      %v536 = vmul.f32 %v533, %v302
      %v537 = vadd.f32 %v529, %v535
      %v538 = vadd.f32 %v530, %v536
      %v539 = vmax.f32 %v537, 0.0
      %v540 = vmax.f32 %v538, 0.0
      %542 = vset.pattern.permute.xlu0 0
      %543 = vperm.xlu0 %542, %v259
      %v544 = vpop.permute.xlu0 %543
      %v546 = vmul.f32 %v539, %v544
      %v547 = vmul.f32 %v540, %v544
      %v548 = vadd.f32 %v499, %v546
      %v549 = vadd.f32 %v500, %v547
      %551 = vset.pattern.permute.xlu0 0
      %552 = vperm.xlu0 %551, %v228
      %v553 = vpop.permute.xlu0 %552
      %v555 = vmul.f32 %v553, %v280
      %v556 = vmul.f32 %v553, %v281
      %558 = vset.pattern.permute.xlu0 0
      %559 = vperm.xlu0 %558, %v244
      %v560 = vpop.permute.xlu0 %559
      %v562 = vadd.f32 %v560, %v555
      %v563 = vadd.f32 %v560, %v556
      %564 = vset.pattern.permute.xlu0 1
      %565 = vperm.xlu0 %564, %v228
      %v566 = vpop.permute.xlu0 %565
      %v568 = vmul.f32 %v566, %v287
      %v569 = vmul.f32 %v566, %v288
      %v570 = vadd.f32 %v562, %v568
      %v571 = vadd.f32 %v563, %v569
      %572 = vset.pattern.permute.xlu0 2
      %573 = vperm.xlu0 %572, %v228
      %v574 = vpop.permute.xlu0 %573
      %v576 = vmul.f32 %v574, %v294
      %v577 = vmul.f32 %v574, %v295
      %v578 = vadd.f32 %v570, %v576
      %v579 = vadd.f32 %v571, %v577
      %580 = vset.pattern.permute.xlu0 3
      %581 = vperm.xlu0 %580, %v228
      %v582 = vpop.permute.xlu0 %581
      %v584 = vmul.f32 %v582, %v301
      %v585 = vmul.f32 %v582, %v302
      %v586 = vadd.f32 %v578, %v584
      %v587 = vadd.f32 %v579, %v585
      %v588 = vmax.f32 %v586, 0.0
      %v589 = vmax.f32 %v587, 0.0
      %591 = vset.pattern.permute.xlu0 0
      %592 = vperm.xlu0 %591, %v260
      %v593 = vpop.permute.xlu0 %592
      %v595 = vmul.f32 %v588, %v593
      %v596 = vmul.f32 %v589, %v593
      %v597 = vadd.f32 %v548, %v595
      %v598 = vadd.f32 %v549, %v596
      %600 = vset.pattern.permute.xlu0 0
      %601 = vperm.xlu0 %600, %v229
      %v602 = vpop.permute.xlu0 %601
      %v604 = vmul.f32 %v602, %v280
      %v605 = vmul.f32 %v602, %v281
      %607 = vset.pattern.permute.xlu0 0
      %608 = vperm.xlu0 %607, %v245
      %v609 = vpop.permute.xlu0 %608
      %v611 = vadd.f32 %v609, %v604
      %v612 = vadd.f32 %v609, %v605
      %613 = vset.pattern.permute.xlu0 1
      %614 = vperm.xlu0 %613, %v229
      %v615 = vpop.permute.xlu0 %614
      %v617 = vmul.f32 %v615, %v287
      %v618 = vmul.f32 %v615, %v288
      %v619 = vadd.f32 %v611, %v617
      %v620 = vadd.f32 %v612, %v618
      %621 = vset.pattern.permute.xlu0 2
      %622 = vperm.xlu0 %621, %v229
      %v623 = vpop.permute.xlu0 %622
      %v625 = vmul.f32 %v623, %v294
      %v626 = vmul.f32 %v623, %v295
      %v627 = vadd.f32 %v619, %v625
      %v628 = vadd.f32 %v620, %v626
      %629 = vset.pattern.permute.xlu0 3
      %630 = vperm.xlu0 %629, %v229
      %v631 = vpop.permute.xlu0 %630
      %v633 = vmul.f32 %v631, %v301
      %v634 = vmul.f32 %v631, %v302
      %v635 = vadd.f32 %v627, %v633
      %v636 = vadd.f32 %v628, %v634
      %v637 = vmax.f32 %v635, 0.0
      %v638 = vmax.f32 %v636, 0.0
      %640 = vset.pattern.permute.xlu0 0
      %641 = vperm.xlu0 %640, %v261
      %v642 = vpop.permute.xlu0 %641
      %v644 = vmul.f32 %v637, %v642
      %v645 = vmul.f32 %v638, %v642
      %v646 = vadd.f32 %v597, %v644
      %v647 = vadd.f32 %v598, %v645
      %649 = vset.pattern.permute.xlu0 0
      %650 = vperm.xlu0 %649, %v230
      %v651 = vpop.permute.xlu0 %650
      %v653 = vmul.f32 %v651, %v280
      %v654 = vmul.f32 %v651, %v281
      %656 = vset.pattern.permute.xlu0 0
      %657 = vperm.xlu0 %656, %v246
      %v658 = vpop.permute.xlu0 %657
      %v660 = vadd.f32 %v658, %v653
      %v661 = vadd.f32 %v658, %v654
      %662 = vset.pattern.permute.xlu0 1
      %663 = vperm.xlu0 %662, %v230
      %v664 = vpop.permute.xlu0 %663
      %v666 = vmul.f32 %v664, %v287
      %v667 = vmul.f32 %v664, %v288
      %v668 = vadd.f32 %v660, %v666
      %v669 = vadd.f32 %v661, %v667
      %670 = vset.pattern.permute.xlu0 2
      %671 = vperm.xlu0 %670, %v230
      %v672 = vpop.permute.xlu0 %671
      %v674 = vmul.f32 %v672, %v294
      %v675 = vmul.f32 %v672, %v295
      %v676 = vadd.f32 %v668, %v674
      %v677 = vadd.f32 %v669, %v675
      %678 = vset.pattern.permute.xlu0 3
      %679 = vperm.xlu0 %678, %v230
      %v680 = vpop.permute.xlu0 %679
      %v682 = vmul.f32 %v680, %v301
      %v683 = vmul.f32 %v680, %v302
      %v684 = vadd.f32 %v676, %v682
      %v685 = vadd.f32 %v677, %v683
      %v686 = vmax.f32 %v684, 0.0
      %v687 = vmax.f32 %v685, 0.0
      %689 = vset.pattern.permute.xlu0 0
      %690 = vperm.xlu0 %689, %v262
      %v691 = vpop.permute.xlu0 %690
      %v693 = vmul.f32 %v686, %v691
      %v694 = vmul.f32 %v687, %v691
      %v695 = vadd.f32 %v646, %v693
      %v696 = vadd.f32 %v647, %v694
      %698 = vset.pattern.permute.xlu0 0
      %699 = vperm.xlu0 %698, %v231
      %v700 = vpop.permute.xlu0 %699
      %v702 = vmul.f32 %v700, %v280
      %v703 = vmul.f32 %v700, %v281
      %705 = vset.pattern.permute.xlu0 0
      %706 = vperm.xlu0 %705, %v247
      %v707 = vpop.permute.xlu0 %706
      %v709 = vadd.f32 %v707, %v702
      %v710 = vadd.f32 %v707, %v703
      %711 = vset.pattern.permute.xlu0 1
      %712 = vperm.xlu0 %711, %v231
      %v713 = vpop.permute.xlu0 %712
      %v715 = vmul.f32 %v713, %v287
      %v716 = vmul.f32 %v713, %v288
      %v717 = vadd.f32 %v709, %v715
      %v718 = vadd.f32 %v710, %v716
      %719 = vset.pattern.permute.xlu0 2
      %720 = vperm.xlu0 %719, %v231
      %v721 = vpop.permute.xlu0 %720
      %v723 = vmul.f32 %v721, %v294
      %v724 = vmul.f32 %v721, %v295
      %v725 = vadd.f32 %v717, %v723
      %v726 = vadd.f32 %v718, %v724
      %727 = vset.pattern.permute.xlu0 3
      %728 = vperm.xlu0 %727, %v231
      %v729 = vpop.permute.xlu0 %728
      %v731 = vmul.f32 %v729, %v301
      %v732 = vmul.f32 %v729, %v302
      %v733 = vadd.f32 %v725, %v731
      %v734 = vadd.f32 %v726, %v732
      %v735 = vmax.f32 %v733, 0.0
      %v736 = vmax.f32 %v734, 0.0
      %738 = vset.pattern.permute.xlu0 0
      %739 = vperm.xlu0 %738, %v263
      %v740 = vpop.permute.xlu0 %739
      %v742 = vmul.f32 %v735, %v740
      %v743 = vmul.f32 %v736, %v740
      %v744 = vadd.f32 %v695, %v742
      %v745 = vadd.f32 %v696, %v743
      %747 = vset.pattern.permute.xlu0 0
      %748 = vperm.xlu0 %747, %v232
      %v749 = vpop.permute.xlu0 %748
      %v751 = vmul.f32 %v749, %v280
      %v752 = vmul.f32 %v749, %v281
      %754 = vset.pattern.permute.xlu0 0
      %755 = vperm.xlu0 %754, %v248
      %v756 = vpop.permute.xlu0 %755
      %v758 = vadd.f32 %v756, %v751
      %v759 = vadd.f32 %v756, %v752
      %760 = vset.pattern.permute.xlu0 1
      %761 = vperm.xlu0 %760, %v232
      %v762 = vpop.permute.xlu0 %761
      %v764 = vmul.f32 %v762, %v287
      %v765 = vmul.f32 %v762, %v288
      %v766 = vadd.f32 %v758, %v764
      %v767 = vadd.f32 %v759, %v765
      %768 = vset.pattern.permute.xlu0 2
      %769 = vperm.xlu0 %768, %v232
      %v770 = vpop.permute.xlu0 %769
      %v772 = vmul.f32 %v770, %v294
      %v773 = vmul.f32 %v770, %v295
      %v774 = vadd.f32 %v766, %v772
      %v775 = vadd.f32 %v767, %v773
      %776 = vset.pattern.permute.xlu0 3
      %777 = vperm.xlu0 %776, %v232
      %v778 = vpop.permute.xlu0 %777
      %v780 = vmul.f32 %v778, %v301
      %v781 = vmul.f32 %v778, %v302
      %v782 = vadd.f32 %v774, %v780
      %v783 = vadd.f32 %v775, %v781
      %v784 = vmax.f32 %v782, 0.0
      %v785 = vmax.f32 %v783, 0.0
      %787 = vset.pattern.permute.xlu0 0
      %788 = vperm.xlu0 %787, %v264
      %v789 = vpop.permute.xlu0 %788
      %v791 = vmul.f32 %v784, %v789
      %v792 = vmul.f32 %v785, %v789
      %v793 = vadd.f32 %v744, %v791
      %v794 = vadd.f32 %v745, %v792
      %796 = vset.pattern.permute.xlu0 0
      %797 = vperm.xlu0 %796, %v233
      %v798 = vpop.permute.xlu0 %797
      %v800 = vmul.f32 %v798, %v280
      %v801 = vmul.f32 %v798, %v281
      %803 = vset.pattern.permute.xlu0 0
      %804 = vperm.xlu0 %803, %v249
      %v805 = vpop.permute.xlu0 %804
      %v807 = vadd.f32 %v805, %v800
      %v808 = vadd.f32 %v805, %v801
      %809 = vset.pattern.permute.xlu0 1
      %810 = vperm.xlu0 %809, %v233
      %v811 = vpop.permute.xlu0 %810
      %v813 = vmul.f32 %v811, %v287
      %v814 = vmul.f32 %v811, %v288
      %v815 = vadd.f32 %v807, %v813
      %v816 = vadd.f32 %v808, %v814
      %817 = vset.pattern.permute.xlu0 2
      %818 = vperm.xlu0 %817, %v233
      %v819 = vpop.permute.xlu0 %818
      %v821 = vmul.f32 %v819, %v294
      %v822 = vmul.f32 %v819, %v295
      %v823 = vadd.f32 %v815, %v821
      %v824 = vadd.f32 %v816, %v822
      %825 = vset.pattern.permute.xlu0 3
      %826 = vperm.xlu0 %825, %v233
      %v827 = vpop.permute.xlu0 %826
      %v829 = vmul.f32 %v827, %v301
      %v830 = vmul.f32 %v827, %v302
      %v831 = vadd.f32 %v823, %v829
      %v832 = vadd.f32 %v824, %v830
      %v833 = vmax.f32 %v831, 0.0
      %v834 = vmax.f32 %v832, 0.0
      %836 = vset.pattern.permute.xlu0 0
      %837 = vperm.xlu0 %836, %v265
      %v838 = vpop.permute.xlu0 %837
      %v840 = vmul.f32 %v833, %v838
      %v841 = vmul.f32 %v834, %v838
      %v842 = vadd.f32 %v793, %v840
      %v843 = vadd.f32 %v794, %v841
      %845 = vset.pattern.permute.xlu0 0
      %846 = vperm.xlu0 %845, %v234
      %v847 = vpop.permute.xlu0 %846
      %v849 = vmul.f32 %v847, %v280
      %v850 = vmul.f32 %v847, %v281
      %852 = vset.pattern.permute.xlu0 0
      %853 = vperm.xlu0 %852, %v250
      %v854 = vpop.permute.xlu0 %853
      %v856 = vadd.f32 %v854, %v849
      %v857 = vadd.f32 %v854, %v850
      %858 = vset.pattern.permute.xlu0 1
      %859 = vperm.xlu0 %858, %v234
      %v860 = vpop.permute.xlu0 %859
      %v862 = vmul.f32 %v860, %v287
      %v863 = vmul.f32 %v860, %v288
      %v864 = vadd.f32 %v856, %v862
      %v865 = vadd.f32 %v857, %v863
      %866 = vset.pattern.permute.xlu0 2
      %867 = vperm.xlu0 %866, %v234
      %v868 = vpop.permute.xlu0 %867
      %v870 = vmul.f32 %v868, %v294
      %v871 = vmul.f32 %v868, %v295
      %v872 = vadd.f32 %v864, %v870
      %v873 = vadd.f32 %v865, %v871
      %874 = vset.pattern.permute.xlu0 3
      %875 = vperm.xlu0 %874, %v234
      %v876 = vpop.permute.xlu0 %875
      %v878 = vmul.f32 %v876, %v301
      %v879 = vmul.f32 %v876, %v302
      %v880 = vadd.f32 %v872, %v878
      %v881 = vadd.f32 %v873, %v879
      %v882 = vmax.f32 %v880, 0.0
      %v883 = vmax.f32 %v881, 0.0
      %885 = vset.pattern.permute.xlu0 0
      %886 = vperm.xlu0 %885, %v266
      %v887 = vpop.permute.xlu0 %886
      %v889 = vmul.f32 %v882, %v887
      %v890 = vmul.f32 %v883, %v887
      %v891 = vadd.f32 %v842, %v889
      %v892 = vadd.f32 %v843, %v890
      %894 = vset.pattern.permute.xlu0 0
      %895 = vperm.xlu0 %894, %v235
      %v896 = vpop.permute.xlu0 %895
      %v898 = vmul.f32 %v896, %v280
      %v899 = vmul.f32 %v896, %v281
      %901 = vset.pattern.permute.xlu0 0
      %902 = vperm.xlu0 %901, %v251
      %v903 = vpop.permute.xlu0 %902
      %v905 = vadd.f32 %v903, %v898
      %v906 = vadd.f32 %v903, %v899
      %907 = vset.pattern.permute.xlu0 1
      %908 = vperm.xlu0 %907, %v235
      %v909 = vpop.permute.xlu0 %908
      %v911 = vmul.f32 %v909, %v287
      %v912 = vmul.f32 %v909, %v288
      %v913 = vadd.f32 %v905, %v911
      %v914 = vadd.f32 %v906, %v912
      %915 = vset.pattern.permute.xlu0 2
      %916 = vperm.xlu0 %915, %v235
      %v917 = vpop.permute.xlu0 %916
      %v919 = vmul.f32 %v917, %v294
      %v920 = vmul.f32 %v917, %v295
      %v921 = vadd.f32 %v913, %v919
      %v922 = vadd.f32 %v914, %v920
      %923 = vset.pattern.permute.xlu0 3
      %924 = vperm.xlu0 %923, %v235
      %v925 = vpop.permute.xlu0 %924
      %v927 = vmul.f32 %v925, %v301
      %v928 = vmul.f32 %v925, %v302
      %v929 = vadd.f32 %v921, %v927
      %v930 = vadd.f32 %v922, %v928
      %v931 = vmax.f32 %v929, 0.0
      %v932 = vmax.f32 %v930, 0.0
      %934 = vset.pattern.permute.xlu0 0
      %935 = vperm.xlu0 %934, %v267
      %v936 = vpop.permute.xlu0 %935
      %v938 = vmul.f32 %v931, %v936
      %v939 = vmul.f32 %v932, %v936
      %v940 = vadd.f32 %v891, %v938
      %v941 = vadd.f32 %v892, %v939
      %943 = vset.pattern.permute.xlu0 0
      %944 = vperm.xlu0 %943, %v236
      %v945 = vpop.permute.xlu0 %944
      %v947 = vmul.f32 %v945, %v280
      %v948 = vmul.f32 %v945, %v281
      %950 = vset.pattern.permute.xlu0 0
      %951 = vperm.xlu0 %950, %v252
      %v952 = vpop.permute.xlu0 %951
      %v954 = vadd.f32 %v952, %v947
      %v955 = vadd.f32 %v952, %v948
      %956 = vset.pattern.permute.xlu0 1
      %957 = vperm.xlu0 %956, %v236
      %v958 = vpop.permute.xlu0 %957
      %v960 = vmul.f32 %v958, %v287
      %v961 = vmul.f32 %v958, %v288
      %v962 = vadd.f32 %v954, %v960
      %v963 = vadd.f32 %v955, %v961
      %964 = vset.pattern.permute.xlu0 2
      %965 = vperm.xlu0 %964, %v236
      %v966 = vpop.permute.xlu0 %965
      %v968 = vmul.f32 %v966, %v294
      %v969 = vmul.f32 %v966, %v295
      %v970 = vadd.f32 %v962, %v968
      %v971 = vadd.f32 %v963, %v969
      %972 = vset.pattern.permute.xlu0 3
      %973 = vperm.xlu0 %972, %v236
      %v974 = vpop.permute.xlu0 %973
      %v976 = vmul.f32 %v974, %v301
      %v977 = vmul.f32 %v974, %v302
      %v978 = vadd.f32 %v970, %v976
      %v979 = vadd.f32 %v971, %v977
      %v980 = vmax.f32 %v978, 0.0
      %v981 = vmax.f32 %v979, 0.0
      %983 = vset.pattern.permute.xlu0 0
      %984 = vperm.xlu0 %983, %v268
      %v985 = vpop.permute.xlu0 %984
      %v987 = vmul.f32 %v980, %v985
      %v988 = vmul.f32 %v981, %v985
      %v989 = vadd.f32 %v940, %v987
      %v990 = vadd.f32 %v941, %v988
      %992 = vset.pattern.permute.xlu0 0
      %993 = vperm.xlu0 %992, %v237
      %v994 = vpop.permute.xlu0 %993
      %v996 = vmul.f32 %v994, %v280
      %v997 = vmul.f32 %v994, %v281
      %999 = vset.pattern.permute.xlu0 0
      %1000 = vperm.xlu0 %999, %v253
      %v1001 = vpop.permute.xlu0 %1000
      %v1003 = vadd.f32 %v1001, %v996
      %v1004 = vadd.f32 %v1001, %v997
      %1005 = vset.pattern.permute.xlu0 1
      %1006 = vperm.xlu0 %1005, %v237
      %v1007 = vpop.permute.xlu0 %1006
      %v1009 = vmul.f32 %v1007, %v287
      %v1010 = vmul.f32 %v1007, %v288
      %v1011 = vadd.f32 %v1003, %v1009
      %v1012 = vadd.f32 %v1004, %v1010
      %1013 = vset.pattern.permute.xlu0 2
      %1014 = vperm.xlu0 %1013, %v237
      %v1015 = vpop.permute.xlu0 %1014
      %v1017 = vmul.f32 %v1015, %v294
      %v1018 = vmul.f32 %v1015, %v295
      %v1019 = vadd.f32 %v1011, %v1017
      %v1020 = vadd.f32 %v1012, %v1018
      %1021 = vset.pattern.permute.xlu0 3
      %1022 = vperm.xlu0 %1021, %v237
      %v1023 = vpop.permute.xlu0 %1022
      %v1025 = vmul.f32 %v1023, %v301
      %v1026 = vmul.f32 %v1023, %v302
      %v1027 = vadd.f32 %v1019, %v1025
      %v1028 = vadd.f32 %v1020, %v1026
      %v1029 = vmax.f32 %v1027, 0.0
      %v1030 = vmax.f32 %v1028, 0.0
      %1032 = vset.pattern.permute.xlu0 0
      %1033 = vperm.xlu0 %1032, %v269
      %v1034 = vpop.permute.xlu0 %1033
      %v1036 = vmul.f32 %v1029, %v1034
      %v1037 = vmul.f32 %v1030, %v1034
      %v1038 = vadd.f32 %v989, %v1036
      %v1039 = vadd.f32 %v990, %v1037
      %1041 = vset.pattern.permute.xlu0 0
      %1042 = vperm.xlu0 %1041, %v238
      %v1043 = vpop.permute.xlu0 %1042
      %v1045 = vmul.f32 %v1043, %v280
      %v1046 = vmul.f32 %v1043, %v281
      %1048 = vset.pattern.permute.xlu0 0
      %1049 = vperm.xlu0 %1048, %v254
      %v1050 = vpop.permute.xlu0 %1049
      %v1052 = vadd.f32 %v1050, %v1045
      %v1053 = vadd.f32 %v1050, %v1046
      %1054 = vset.pattern.permute.xlu0 1
      %1055 = vperm.xlu0 %1054, %v238
      %v1056 = vpop.permute.xlu0 %1055
      %v1058 = vmul.f32 %v1056, %v287
      %v1059 = vmul.f32 %v1056, %v288
      %v1060 = vadd.f32 %v1052, %v1058
      %v1061 = vadd.f32 %v1053, %v1059
      %1062 = vset.pattern.permute.xlu0 2
      %1063 = vperm.xlu0 %1062, %v238
      %v1064 = vpop.permute.xlu0 %1063
      %v1066 = vmul.f32 %v1064, %v294
      %v1067 = vmul.f32 %v1064, %v295
      %v1068 = vadd.f32 %v1060, %v1066
      %v1069 = vadd.f32 %v1061, %v1067
      %1070 = vset.pattern.permute.xlu0 3
      %1071 = vperm.xlu0 %1070, %v238
      %v1072 = vpop.permute.xlu0 %1071
      %v1074 = vmul.f32 %v1072, %v301
      %v1075 = vmul.f32 %v1072, %v302
      %v1076 = vadd.f32 %v1068, %v1074
      %v1077 = vadd.f32 %v1069, %v1075
      %v1078 = vmax.f32 %v1076, 0.0
      %v1079 = vmax.f32 %v1077, 0.0
      %1081 = vset.pattern.permute.xlu0 0
      %1082 = vperm.xlu0 %1081, %v270
      %v1083 = vpop.permute.xlu0 %1082
      %v1085 = vmul.f32 %v1078, %v1083
      %v1086 = vmul.f32 %v1079, %v1083
      %v1087 = vadd.f32 %v1038, %v1085
      %v1088 = vadd.f32 %v1039, %v1086
      %v1089 = vrot.slane %v1087, 4
      %v1090 = vadd.f32 %v1087, %v1089
      %v1091 = vrot.slane %v1090, 2
      %v1092 = vadd.f32 %v1090, %v1091
      %v1093 = vrot.slane %v1092, 1
      %v1094 = vadd.f32 %v1092, %v1093
      %v1095 = vrot.slane %v1088, 4
      %v1096 = vadd.f32 %v1088, %v1095
      %v1097 = vrot.slane %v1096, 2
      %v1098 = vadd.f32 %v1096, %v1097
      %v1099 = vrot.slane %v1098, 1
      %v1100 = vadd.f32 %v1098, %v1099
      %1102 = vset.pattern.permute.xlu0 0
      %1103 = vperm.xlu0 %1102, %v271
      %v1104 = vpop.permute.xlu0 %1103
      %v1106 = vperm.slane %v1104, 0
      %v1107 = vadd.f32 %v1094, %v1106
      %v1108 = vadd.f32 %v1100, %v1106
      %v1109 = vand.u32 2147483647, %v1107
      %v1110 = vand.u32 2147483647, %v1108
      %vm1111 = vcmp.eq.s32.totalorder %v273, %v276
      %vm1112 = vcmp.eq.s32.totalorder %v274, %v276
      %vm1113 = vcmp.eq.s32.totalorder %v273, %v277
      %vm1114 = vcmp.eq.s32.totalorder %v274, %v277
      %v1115 = vsel %vm1111, %v1109, 0.0
      %v1116 = vsel %vm1112, %v1110, 0.0
      %v1117 = vsel %vm1113, %v1109, 0.0
      %v1118 = vsel %vm1114, %v1110, 0.0
      %v1119 = vadd.f32 %v1115, %v1116
      %1120 = vadd.xlane.f32.xlu0 %v1119
      %v1121 = vpop.xlane.xlu0 %1120
      %v1122 = vadd.f32 %v1117, %v1118
      %1123 = vadd.xlane.f32.xlu0 %v1122
      %v1124 = vpop.xlane.xlu0 %1123
      %vm1125 = vcmp.gt.f32.partialorder %v1109, %v1121
      %vm1126 = vcmp.gt.f32.partialorder %v1110, %v1121
      %vm1127 = vcmp.gt.f32.partialorder %v1109, %v1124
      %vm1128 = vcmp.gt.f32.partialorder %v1110, %v1124
      %v1129 = vsel %vm1125, 1.0, 0.0
      %v1130 = vsel %vm1126, 1.0, 0.0
      %v1131 = vsel %vm1127, 1.0, 0.0
      %v1132 = vsel %vm1128, 1.0, 0.0
      %v1133 = vadd.f32 %v1129, %v1130
      %1134 = vadd.xlane.f32.xlu0 %v1133
      %v1135 = vpop.xlane.xlu0 %1134
      %v1136 = vadd.f32 %v1131, %v1132
      %1137 = vadd.xlane.f32.xlu0 %v1136
      %v1138 = vpop.xlane.xlu0 %1137
      %vm1139 = vcmp.lt.f32.partialorder %v1135, 25.0
      %vm1140 = vcmp.lt.f32.partialorder %v1138, 25.0
      %v1141 = vsel %vm1139, %v1121, inf
      %v1142 = vsel %vm1140, %v1124, inf
      %v1143 = vadd.s32 %v276, 16
      %v1144 = vadd.s32 %v277, 16
      %vm1145 = vcmp.eq.s32.totalorder %v273, %v1143
      %vm1146 = vcmp.eq.s32.totalorder %v274, %v1143
      %vm1147 = vcmp.eq.s32.totalorder %v273, %v1144
      %vm1148 = vcmp.eq.s32.totalorder %v274, %v1144
      %v1149 = vsel %vm1145, %v1109, 0.0
      %v1150 = vsel %vm1146, %v1110, 0.0
      %v1151 = vsel %vm1147, %v1109, 0.0
      %v1152 = vsel %vm1148, %v1110, 0.0
      %v1153 = vadd.f32 %v1149, %v1150
      %1154 = vadd.xlane.f32.xlu0 %v1153
      %v1155 = vpop.xlane.xlu0 %1154
      %v1156 = vadd.f32 %v1151, %v1152
      %1157 = vadd.xlane.f32.xlu0 %v1156
      %v1158 = vpop.xlane.xlu0 %1157
      %vm1159 = vcmp.gt.f32.partialorder %v1109, %v1155
      %vm1160 = vcmp.gt.f32.partialorder %v1110, %v1155
      %vm1161 = vcmp.gt.f32.partialorder %v1109, %v1158
      %vm1162 = vcmp.gt.f32.partialorder %v1110, %v1158
      %v1163 = vsel %vm1159, 1.0, 0.0
      %v1164 = vsel %vm1160, 1.0, 0.0
      %v1165 = vsel %vm1161, 1.0, 0.0
      %v1166 = vsel %vm1162, 1.0, 0.0
      %v1167 = vadd.f32 %v1163, %v1164
      %1168 = vadd.xlane.f32.xlu0 %v1167
      %v1169 = vpop.xlane.xlu0 %1168
      %v1170 = vadd.f32 %v1165, %v1166
      %1171 = vadd.xlane.f32.xlu0 %v1170
      %v1172 = vpop.xlane.xlu0 %1171
      %vm1173 = vcmp.lt.f32.partialorder %v1169, 25.0
      %vm1174 = vcmp.lt.f32.partialorder %v1172, 25.0
      %v1175 = vsel %vm1173, %v1155, inf
      %v1176 = vsel %vm1174, %v1158, inf
      %v1177 = vmin.f32 %v1141, %v1175
      %v1178 = vmin.f32 %v1142, %v1176
      %v1179 = vadd.s32 %v276, 32
      %v1180 = vadd.s32 %v277, 32
      %vm1181 = vcmp.eq.s32.totalorder %v273, %v1179
      %vm1182 = vcmp.eq.s32.totalorder %v274, %v1179
      %vm1183 = vcmp.eq.s32.totalorder %v273, %v1180
      %vm1184 = vcmp.eq.s32.totalorder %v274, %v1180
      %v1185 = vsel %vm1181, %v1109, 0.0
      %v1186 = vsel %vm1182, %v1110, 0.0
      %v1187 = vsel %vm1183, %v1109, 0.0
      %v1188 = vsel %vm1184, %v1110, 0.0
      %v1189 = vadd.f32 %v1185, %v1186
      %1190 = vadd.xlane.f32.xlu0 %v1189
      %v1191 = vpop.xlane.xlu0 %1190
      %v1192 = vadd.f32 %v1187, %v1188
      %1193 = vadd.xlane.f32.xlu0 %v1192
      %v1194 = vpop.xlane.xlu0 %1193
      %vm1195 = vcmp.gt.f32.partialorder %v1109, %v1191
      %vm1196 = vcmp.gt.f32.partialorder %v1110, %v1191
      %vm1197 = vcmp.gt.f32.partialorder %v1109, %v1194
      %vm1198 = vcmp.gt.f32.partialorder %v1110, %v1194
      %v1199 = vsel %vm1195, 1.0, 0.0
      %v1200 = vsel %vm1196, 1.0, 0.0
      %v1201 = vsel %vm1197, 1.0, 0.0
      %v1202 = vsel %vm1198, 1.0, 0.0
      %v1203 = vadd.f32 %v1199, %v1200
      %1204 = vadd.xlane.f32.xlu0 %v1203
      %v1205 = vpop.xlane.xlu0 %1204
      %v1206 = vadd.f32 %v1201, %v1202
      %1207 = vadd.xlane.f32.xlu0 %v1206
      %v1208 = vpop.xlane.xlu0 %1207
      %vm1209 = vcmp.lt.f32.partialorder %v1205, 25.0
      %vm1210 = vcmp.lt.f32.partialorder %v1208, 25.0
      %v1211 = vsel %vm1209, %v1191, inf
      %v1212 = vsel %vm1210, %v1194, inf
      %v1213 = vmin.f32 %v1177, %v1211
      %v1214 = vmin.f32 %v1178, %v1212
      %v1215 = vadd.s32 %v276, 48
      %v1216 = vadd.s32 %v277, 48
      %vm1217 = vcmp.eq.s32.totalorder %v273, %v1215
      %vm1218 = vcmp.eq.s32.totalorder %v274, %v1215
      %vm1219 = vcmp.eq.s32.totalorder %v273, %v1216
      %vm1220 = vcmp.eq.s32.totalorder %v274, %v1216
      %v1221 = vsel %vm1217, %v1109, 0.0
      %v1222 = vsel %vm1218, %v1110, 0.0
      %v1223 = vsel %vm1219, %v1109, 0.0
      %v1224 = vsel %vm1220, %v1110, 0.0
      %v1225 = vadd.f32 %v1221, %v1222
      %1226 = vadd.xlane.f32.xlu0 %v1225
      %v1227 = vpop.xlane.xlu0 %1226
      %v1228 = vadd.f32 %v1223, %v1224
      %1229 = vadd.xlane.f32.xlu0 %v1228
      %v1230 = vpop.xlane.xlu0 %1229
      %vm1231 = vcmp.gt.f32.partialorder %v1109, %v1227
      %vm1232 = vcmp.gt.f32.partialorder %v1110, %v1227
      %vm1233 = vcmp.gt.f32.partialorder %v1109, %v1230
      %vm1234 = vcmp.gt.f32.partialorder %v1110, %v1230
      %v1235 = vsel %vm1231, 1.0, 0.0
      %v1236 = vsel %vm1232, 1.0, 0.0
      %v1237 = vsel %vm1233, 1.0, 0.0
      %v1238 = vsel %vm1234, 1.0, 0.0
      %v1239 = vadd.f32 %v1235, %v1236
      %1240 = vadd.xlane.f32.xlu0 %v1239
      %v1241 = vpop.xlane.xlu0 %1240
      %v1242 = vadd.f32 %v1237, %v1238
      %1243 = vadd.xlane.f32.xlu0 %v1242
      %v1244 = vpop.xlane.xlu0 %1243
      %vm1245 = vcmp.lt.f32.partialorder %v1241, 25.0
      %vm1246 = vcmp.lt.f32.partialorder %v1244, 25.0
      %v1247 = vsel %vm1245, %v1227, inf
      %v1248 = vsel %vm1246, %v1230, inf
      %v1249 = vmin.f32 %v1213, %v1247
      %v1250 = vmin.f32 %v1214, %v1248
      %v1251 = vadd.s32 %v276, 64
      %v1252 = vadd.s32 %v277, 64
      %vm1253 = vcmp.eq.s32.totalorder %v273, %v1251
      %vm1254 = vcmp.eq.s32.totalorder %v274, %v1251
      %vm1255 = vcmp.eq.s32.totalorder %v273, %v1252
      %vm1256 = vcmp.eq.s32.totalorder %v274, %v1252
      %v1257 = vsel %vm1253, %v1109, 0.0
      %v1258 = vsel %vm1254, %v1110, 0.0
      %v1259 = vsel %vm1255, %v1109, 0.0
      %v1260 = vsel %vm1256, %v1110, 0.0
      %v1261 = vadd.f32 %v1257, %v1258
      %1262 = vadd.xlane.f32.xlu0 %v1261
      %v1263 = vpop.xlane.xlu0 %1262
      %v1264 = vadd.f32 %v1259, %v1260
      %1265 = vadd.xlane.f32.xlu0 %v1264
      %v1266 = vpop.xlane.xlu0 %1265
      %vm1267 = vcmp.gt.f32.partialorder %v1109, %v1263
      %vm1268 = vcmp.gt.f32.partialorder %v1110, %v1263
      %vm1269 = vcmp.gt.f32.partialorder %v1109, %v1266
      %vm1270 = vcmp.gt.f32.partialorder %v1110, %v1266
      %v1271 = vsel %vm1267, 1.0, 0.0
      %v1272 = vsel %vm1268, 1.0, 0.0
      %v1273 = vsel %vm1269, 1.0, 0.0
      %v1274 = vsel %vm1270, 1.0, 0.0
      %v1275 = vadd.f32 %v1271, %v1272
      %1276 = vadd.xlane.f32.xlu0 %v1275
      %v1277 = vpop.xlane.xlu0 %1276
      %v1278 = vadd.f32 %v1273, %v1274
      %1279 = vadd.xlane.f32.xlu0 %v1278
      %v1280 = vpop.xlane.xlu0 %1279
      %vm1281 = vcmp.lt.f32.partialorder %v1277, 25.0
      %vm1282 = vcmp.lt.f32.partialorder %v1280, 25.0
      %v1283 = vsel %vm1281, %v1263, inf
      %v1284 = vsel %vm1282, %v1266, inf
      %v1285 = vmin.f32 %v1249, %v1283
      %v1286 = vmin.f32 %v1250, %v1284
      %v1287 = vadd.s32 %v276, 80
      %v1288 = vadd.s32 %v277, 80
      %vm1289 = vcmp.eq.s32.totalorder %v273, %v1287
      %vm1290 = vcmp.eq.s32.totalorder %v274, %v1287
      %vm1291 = vcmp.eq.s32.totalorder %v273, %v1288
      %vm1292 = vcmp.eq.s32.totalorder %v274, %v1288
      %v1293 = vsel %vm1289, %v1109, 0.0
      %v1294 = vsel %vm1290, %v1110, 0.0
      %v1295 = vsel %vm1291, %v1109, 0.0
      %v1296 = vsel %vm1292, %v1110, 0.0
      %v1297 = vadd.f32 %v1293, %v1294
      %1298 = vadd.xlane.f32.xlu0 %v1297
      %v1299 = vpop.xlane.xlu0 %1298
      %v1300 = vadd.f32 %v1295, %v1296
      %1301 = vadd.xlane.f32.xlu0 %v1300
      %v1302 = vpop.xlane.xlu0 %1301
      %vm1303 = vcmp.gt.f32.partialorder %v1109, %v1299
      %vm1304 = vcmp.gt.f32.partialorder %v1110, %v1299
      %vm1305 = vcmp.gt.f32.partialorder %v1109, %v1302
      %vm1306 = vcmp.gt.f32.partialorder %v1110, %v1302
      %v1307 = vsel %vm1303, 1.0, 0.0
      %v1308 = vsel %vm1304, 1.0, 0.0
      %v1309 = vsel %vm1305, 1.0, 0.0
      %v1310 = vsel %vm1306, 1.0, 0.0
      %v1311 = vadd.f32 %v1307, %v1308
      %1312 = vadd.xlane.f32.xlu0 %v1311
      %v1313 = vpop.xlane.xlu0 %1312
      %v1314 = vadd.f32 %v1309, %v1310
      %1315 = vadd.xlane.f32.xlu0 %v1314
      %v1316 = vpop.xlane.xlu0 %1315
      %vm1317 = vcmp.lt.f32.partialorder %v1313, 25.0
      %vm1318 = vcmp.lt.f32.partialorder %v1316, 25.0
      %v1319 = vsel %vm1317, %v1299, inf
      %v1320 = vsel %vm1318, %v1302, inf
      %v1321 = vmin.f32 %v1285, %v1319
      %v1322 = vmin.f32 %v1286, %v1320
      %v1323 = vadd.s32 %v276, 96
      %v1324 = vadd.s32 %v277, 96
      %vm1325 = vcmp.eq.s32.totalorder %v273, %v1323
      %vm1326 = vcmp.eq.s32.totalorder %v274, %v1323
      %vm1327 = vcmp.eq.s32.totalorder %v273, %v1324
      %vm1328 = vcmp.eq.s32.totalorder %v274, %v1324
      %v1329 = vsel %vm1325, %v1109, 0.0
      %v1330 = vsel %vm1326, %v1110, 0.0
      %v1331 = vsel %vm1327, %v1109, 0.0
      %v1332 = vsel %vm1328, %v1110, 0.0
      %v1333 = vadd.f32 %v1329, %v1330
      %1334 = vadd.xlane.f32.xlu0 %v1333
      %v1335 = vpop.xlane.xlu0 %1334
      %v1336 = vadd.f32 %v1331, %v1332
      %1337 = vadd.xlane.f32.xlu0 %v1336
      %v1338 = vpop.xlane.xlu0 %1337
      %vm1339 = vcmp.gt.f32.partialorder %v1109, %v1335
      %vm1340 = vcmp.gt.f32.partialorder %v1110, %v1335
      %vm1341 = vcmp.gt.f32.partialorder %v1109, %v1338
      %vm1342 = vcmp.gt.f32.partialorder %v1110, %v1338
      %v1343 = vsel %vm1339, 1.0, 0.0
      %v1344 = vsel %vm1340, 1.0, 0.0
      %v1345 = vsel %vm1341, 1.0, 0.0
      %v1346 = vsel %vm1342, 1.0, 0.0
      %v1347 = vadd.f32 %v1343, %v1344
      %1348 = vadd.xlane.f32.xlu0 %v1347
      %v1349 = vpop.xlane.xlu0 %1348
      %v1350 = vadd.f32 %v1345, %v1346
      %1351 = vadd.xlane.f32.xlu0 %v1350
      %v1352 = vpop.xlane.xlu0 %1351
      %vm1353 = vcmp.lt.f32.partialorder %v1349, 25.0
      %vm1354 = vcmp.lt.f32.partialorder %v1352, 25.0
      %v1355 = vsel %vm1353, %v1335, inf
      %v1356 = vsel %vm1354, %v1338, inf
      %v1357 = vmin.f32 %v1321, %v1355
      %v1358 = vmin.f32 %v1322, %v1356
      %v1359 = vadd.s32 %v276, 112
      %v1360 = vadd.s32 %v277, 112
      %vm1361 = vcmp.eq.s32.totalorder %v273, %v1359
      %vm1362 = vcmp.eq.s32.totalorder %v274, %v1359
      %vm1363 = vcmp.eq.s32.totalorder %v273, %v1360
      %vm1364 = vcmp.eq.s32.totalorder %v274, %v1360
      %v1365 = vsel %vm1361, %v1109, 0.0
      %v1366 = vsel %vm1362, %v1110, 0.0
      %v1367 = vsel %vm1363, %v1109, 0.0
      %v1368 = vsel %vm1364, %v1110, 0.0
      %v1369 = vadd.f32 %v1365, %v1366
      %1370 = vadd.xlane.f32.xlu0 %v1369
      %v1371 = vpop.xlane.xlu0 %1370
      %v1372 = vadd.f32 %v1367, %v1368
      %1373 = vadd.xlane.f32.xlu0 %v1372
      %v1374 = vpop.xlane.xlu0 %1373
      %vm1375 = vcmp.gt.f32.partialorder %v1109, %v1371
      %vm1376 = vcmp.gt.f32.partialorder %v1110, %v1371
      %vm1377 = vcmp.gt.f32.partialorder %v1109, %v1374
      %vm1378 = vcmp.gt.f32.partialorder %v1110, %v1374
      %v1379 = vsel %vm1375, 1.0, 0.0
      %v1380 = vsel %vm1376, 1.0, 0.0
      %v1381 = vsel %vm1377, 1.0, 0.0
      %v1382 = vsel %vm1378, 1.0, 0.0
      %v1383 = vadd.f32 %v1379, %v1380
      %1384 = vadd.xlane.f32.xlu0 %v1383
      %v1385 = vpop.xlane.xlu0 %1384
      %v1386 = vadd.f32 %v1381, %v1382
      %1387 = vadd.xlane.f32.xlu0 %v1386
      %v1388 = vpop.xlane.xlu0 %1387
      %vm1389 = vcmp.lt.f32.partialorder %v1385, 25.0
      %vm1390 = vcmp.lt.f32.partialorder %v1388, 25.0
      %v1391 = vsel %vm1389, %v1371, inf
      %v1392 = vsel %vm1390, %v1374, inf
      %v1393 = vmin.f32 %v1357, %v1391
      %v1394 = vmin.f32 %v1358, %v1392
      %v1395 = vadd.s32 %v276, 128
      %v1396 = vadd.s32 %v277, 128
      %vm1397 = vcmp.eq.s32.totalorder %v273, %v1395
      %vm1398 = vcmp.eq.s32.totalorder %v274, %v1395
      %vm1399 = vcmp.eq.s32.totalorder %v273, %v1396
      %vm1400 = vcmp.eq.s32.totalorder %v274, %v1396
      %v1401 = vsel %vm1397, %v1109, 0.0
      %v1402 = vsel %vm1398, %v1110, 0.0
      %v1403 = vsel %vm1399, %v1109, 0.0
      %v1404 = vsel %vm1400, %v1110, 0.0
      %v1405 = vadd.f32 %v1401, %v1402
      %1406 = vadd.xlane.f32.xlu0 %v1405
      %v1407 = vpop.xlane.xlu0 %1406
      %v1408 = vadd.f32 %v1403, %v1404
      %1409 = vadd.xlane.f32.xlu0 %v1408
      %v1410 = vpop.xlane.xlu0 %1409
      %vm1411 = vcmp.gt.f32.partialorder %v1109, %v1407
      %vm1412 = vcmp.gt.f32.partialorder %v1110, %v1407
      %vm1413 = vcmp.gt.f32.partialorder %v1109, %v1410
      %vm1414 = vcmp.gt.f32.partialorder %v1110, %v1410
      %v1415 = vsel %vm1411, 1.0, 0.0
      %v1416 = vsel %vm1412, 1.0, 0.0
      %v1417 = vsel %vm1413, 1.0, 0.0
      %v1418 = vsel %vm1414, 1.0, 0.0
      %v1419 = vadd.f32 %v1415, %v1416
      %1420 = vadd.xlane.f32.xlu0 %v1419
      %v1421 = vpop.xlane.xlu0 %1420
      %v1422 = vadd.f32 %v1417, %v1418
      %1423 = vadd.xlane.f32.xlu0 %v1422
      %v1424 = vpop.xlane.xlu0 %1423
      %vm1425 = vcmp.lt.f32.partialorder %v1421, 25.0
      %vm1426 = vcmp.lt.f32.partialorder %v1424, 25.0
      %v1427 = vsel %vm1425, %v1407, inf
      %v1428 = vsel %vm1426, %v1410, inf
      %v1429 = vmin.f32 %v1393, %v1427
      %v1430 = vmin.f32 %v1394, %v1428
      %v1431 = vadd.s32 %v276, 144
      %v1432 = vadd.s32 %v277, 144
      %vm1433 = vcmp.eq.s32.totalorder %v273, %v1431
      %vm1434 = vcmp.eq.s32.totalorder %v274, %v1431
      %vm1435 = vcmp.eq.s32.totalorder %v273, %v1432
      %vm1436 = vcmp.eq.s32.totalorder %v274, %v1432
      %v1437 = vsel %vm1433, %v1109, 0.0
      %v1438 = vsel %vm1434, %v1110, 0.0
      %v1439 = vsel %vm1435, %v1109, 0.0
      %v1440 = vsel %vm1436, %v1110, 0.0
      %v1441 = vadd.f32 %v1437, %v1438
      %1442 = vadd.xlane.f32.xlu0 %v1441
      %v1443 = vpop.xlane.xlu0 %1442
      %v1444 = vadd.f32 %v1439, %v1440
      %1445 = vadd.xlane.f32.xlu0 %v1444
      %v1446 = vpop.xlane.xlu0 %1445
      %vm1447 = vcmp.gt.f32.partialorder %v1109, %v1443
      %vm1448 = vcmp.gt.f32.partialorder %v1110, %v1443
      %vm1449 = vcmp.gt.f32.partialorder %v1109, %v1446
      %vm1450 = vcmp.gt.f32.partialorder %v1110, %v1446
      %v1451 = vsel %vm1447, 1.0, 0.0
      %v1452 = vsel %vm1448, 1.0, 0.0
      %v1453 = vsel %vm1449, 1.0, 0.0
      %v1454 = vsel %vm1450, 1.0, 0.0
      %v1455 = vadd.f32 %v1451, %v1452
      %1456 = vadd.xlane.f32.xlu0 %v1455
      %v1457 = vpop.xlane.xlu0 %1456
      %v1458 = vadd.f32 %v1453, %v1454
      %1459 = vadd.xlane.f32.xlu0 %v1458
      %v1460 = vpop.xlane.xlu0 %1459
      %vm1461 = vcmp.lt.f32.partialorder %v1457, 25.0
      %vm1462 = vcmp.lt.f32.partialorder %v1460, 25.0
      %v1463 = vsel %vm1461, %v1443, inf
      %v1464 = vsel %vm1462, %v1446, inf
      %v1465 = vmin.f32 %v1429, %v1463
      %v1466 = vmin.f32 %v1430, %v1464
      %v1467 = vadd.s32 %v276, 160
      %v1468 = vadd.s32 %v277, 160
      %vm1469 = vcmp.eq.s32.totalorder %v273, %v1467
      %vm1470 = vcmp.eq.s32.totalorder %v274, %v1467
      %vm1471 = vcmp.eq.s32.totalorder %v273, %v1468
      %vm1472 = vcmp.eq.s32.totalorder %v274, %v1468
      %v1473 = vsel %vm1469, %v1109, 0.0
      %v1474 = vsel %vm1470, %v1110, 0.0
      %v1475 = vsel %vm1471, %v1109, 0.0
      %v1476 = vsel %vm1472, %v1110, 0.0
      %v1477 = vadd.f32 %v1473, %v1474
      %1478 = vadd.xlane.f32.xlu0 %v1477
      %v1479 = vpop.xlane.xlu0 %1478
      %v1480 = vadd.f32 %v1475, %v1476
      %1481 = vadd.xlane.f32.xlu0 %v1480
      %v1482 = vpop.xlane.xlu0 %1481
      %vm1483 = vcmp.gt.f32.partialorder %v1109, %v1479
      %vm1484 = vcmp.gt.f32.partialorder %v1110, %v1479
      %vm1485 = vcmp.gt.f32.partialorder %v1109, %v1482
      %vm1486 = vcmp.gt.f32.partialorder %v1110, %v1482
      %v1487 = vsel %vm1483, 1.0, 0.0
      %v1488 = vsel %vm1484, 1.0, 0.0
      %v1489 = vsel %vm1485, 1.0, 0.0
      %v1490 = vsel %vm1486, 1.0, 0.0
      %v1491 = vadd.f32 %v1487, %v1488
      %1492 = vadd.xlane.f32.xlu0 %v1491
      %v1493 = vpop.xlane.xlu0 %1492
      %v1494 = vadd.f32 %v1489, %v1490
      %1495 = vadd.xlane.f32.xlu0 %v1494
      %v1496 = vpop.xlane.xlu0 %1495
      %vm1497 = vcmp.lt.f32.partialorder %v1493, 25.0
      %vm1498 = vcmp.lt.f32.partialorder %v1496, 25.0
      %v1499 = vsel %vm1497, %v1479, inf
      %v1500 = vsel %vm1498, %v1482, inf
      %v1501 = vmin.f32 %v1465, %v1499
      %v1502 = vmin.f32 %v1466, %v1500
      %v1503 = vadd.s32 %v276, 176
      %v1504 = vadd.s32 %v277, 176
      %vm1505 = vcmp.eq.s32.totalorder %v273, %v1503
      %vm1506 = vcmp.eq.s32.totalorder %v274, %v1503
      %vm1507 = vcmp.eq.s32.totalorder %v273, %v1504
      %vm1508 = vcmp.eq.s32.totalorder %v274, %v1504
      %v1509 = vsel %vm1505, %v1109, 0.0
      %v1510 = vsel %vm1506, %v1110, 0.0
      %v1511 = vsel %vm1507, %v1109, 0.0
      %v1512 = vsel %vm1508, %v1110, 0.0
      %v1513 = vadd.f32 %v1509, %v1510
      %1514 = vadd.xlane.f32.xlu0 %v1513
      %v1515 = vpop.xlane.xlu0 %1514
      %v1516 = vadd.f32 %v1511, %v1512
      %1517 = vadd.xlane.f32.xlu0 %v1516
      %v1518 = vpop.xlane.xlu0 %1517
      %vm1519 = vcmp.gt.f32.partialorder %v1109, %v1515
      %vm1520 = vcmp.gt.f32.partialorder %v1110, %v1515
      %vm1521 = vcmp.gt.f32.partialorder %v1109, %v1518
      %vm1522 = vcmp.gt.f32.partialorder %v1110, %v1518
      %v1523 = vsel %vm1519, 1.0, 0.0
      %v1524 = vsel %vm1520, 1.0, 0.0
      %v1525 = vsel %vm1521, 1.0, 0.0
      %v1526 = vsel %vm1522, 1.0, 0.0
      %v1527 = vadd.f32 %v1523, %v1524
      %1528 = vadd.xlane.f32.xlu0 %v1527
      %v1529 = vpop.xlane.xlu0 %1528
      %v1530 = vadd.f32 %v1525, %v1526
      %1531 = vadd.xlane.f32.xlu0 %v1530
      %v1532 = vpop.xlane.xlu0 %1531
      %vm1533 = vcmp.lt.f32.partialorder %v1529, 25.0
      %vm1534 = vcmp.lt.f32.partialorder %v1532, 25.0
      %v1535 = vsel %vm1533, %v1515, inf
      %v1536 = vsel %vm1534, %v1518, inf
      %v1537 = vmin.f32 %v1501, %v1535
      %v1538 = vmin.f32 %v1502, %v1536
      %v1539 = vadd.s32 %v276, 192
      %v1540 = vadd.s32 %v277, 192
      %vm1541 = vcmp.eq.s32.totalorder %v273, %v1539
      %vm1542 = vcmp.eq.s32.totalorder %v274, %v1539
      %vm1543 = vcmp.eq.s32.totalorder %v273, %v1540
      %vm1544 = vcmp.eq.s32.totalorder %v274, %v1540
      %v1545 = vsel %vm1541, %v1109, 0.0
      %v1546 = vsel %vm1542, %v1110, 0.0
      %v1547 = vsel %vm1543, %v1109, 0.0
      %v1548 = vsel %vm1544, %v1110, 0.0
      %v1549 = vadd.f32 %v1545, %v1546
      %1550 = vadd.xlane.f32.xlu0 %v1549
      %v1551 = vpop.xlane.xlu0 %1550
      %v1552 = vadd.f32 %v1547, %v1548
      %1553 = vadd.xlane.f32.xlu0 %v1552
      %v1554 = vpop.xlane.xlu0 %1553
      %vm1555 = vcmp.gt.f32.partialorder %v1109, %v1551
      %vm1556 = vcmp.gt.f32.partialorder %v1110, %v1551
      %vm1557 = vcmp.gt.f32.partialorder %v1109, %v1554
      %vm1558 = vcmp.gt.f32.partialorder %v1110, %v1554
      %v1559 = vsel %vm1555, 1.0, 0.0
      %v1560 = vsel %vm1556, 1.0, 0.0
      %v1561 = vsel %vm1557, 1.0, 0.0
      %v1562 = vsel %vm1558, 1.0, 0.0
      %v1563 = vadd.f32 %v1559, %v1560
      %1564 = vadd.xlane.f32.xlu0 %v1563
      %v1565 = vpop.xlane.xlu0 %1564
      %v1566 = vadd.f32 %v1561, %v1562
      %1567 = vadd.xlane.f32.xlu0 %v1566
      %v1568 = vpop.xlane.xlu0 %1567
      %vm1569 = vcmp.lt.f32.partialorder %v1565, 25.0
      %vm1570 = vcmp.lt.f32.partialorder %v1568, 25.0
      %v1571 = vsel %vm1569, %v1551, inf
      %v1572 = vsel %vm1570, %v1554, inf
      %v1573 = vmin.f32 %v1537, %v1571
      %v1574 = vmin.f32 %v1538, %v1572
      %v1575 = vadd.s32 %v276, 208
      %v1576 = vadd.s32 %v277, 208
      %vm1577 = vcmp.eq.s32.totalorder %v273, %v1575
      %vm1578 = vcmp.eq.s32.totalorder %v274, %v1575
      %vm1579 = vcmp.eq.s32.totalorder %v273, %v1576
      %vm1580 = vcmp.eq.s32.totalorder %v274, %v1576
      %v1581 = vsel %vm1577, %v1109, 0.0
      %v1582 = vsel %vm1578, %v1110, 0.0
      %v1583 = vsel %vm1579, %v1109, 0.0
      %v1584 = vsel %vm1580, %v1110, 0.0
      %v1585 = vadd.f32 %v1581, %v1582
      %1586 = vadd.xlane.f32.xlu0 %v1585
      %v1587 = vpop.xlane.xlu0 %1586
      %v1588 = vadd.f32 %v1583, %v1584
      %1589 = vadd.xlane.f32.xlu0 %v1588
      %v1590 = vpop.xlane.xlu0 %1589
      %vm1591 = vcmp.gt.f32.partialorder %v1109, %v1587
      %vm1592 = vcmp.gt.f32.partialorder %v1110, %v1587
      %vm1593 = vcmp.gt.f32.partialorder %v1109, %v1590
      %vm1594 = vcmp.gt.f32.partialorder %v1110, %v1590
      %v1595 = vsel %vm1591, 1.0, 0.0
      %v1596 = vsel %vm1592, 1.0, 0.0
      %v1597 = vsel %vm1593, 1.0, 0.0
      %v1598 = vsel %vm1594, 1.0, 0.0
      %v1599 = vadd.f32 %v1595, %v1596
      %1600 = vadd.xlane.f32.xlu0 %v1599
      %v1601 = vpop.xlane.xlu0 %1600
      %v1602 = vadd.f32 %v1597, %v1598
      %1603 = vadd.xlane.f32.xlu0 %v1602
      %v1604 = vpop.xlane.xlu0 %1603
      %vm1605 = vcmp.lt.f32.partialorder %v1601, 25.0
      %vm1606 = vcmp.lt.f32.partialorder %v1604, 25.0
      %v1607 = vsel %vm1605, %v1587, inf
      %v1608 = vsel %vm1606, %v1590, inf
      %v1609 = vmin.f32 %v1573, %v1607
      %v1610 = vmin.f32 %v1574, %v1608
      %v1611 = vadd.s32 %v276, 224
      %v1612 = vadd.s32 %v277, 224
      %vm1613 = vcmp.eq.s32.totalorder %v273, %v1611
      %vm1614 = vcmp.eq.s32.totalorder %v274, %v1611
      %vm1615 = vcmp.eq.s32.totalorder %v273, %v1612
      %vm1616 = vcmp.eq.s32.totalorder %v274, %v1612
      %v1617 = vsel %vm1613, %v1109, 0.0
      %v1618 = vsel %vm1614, %v1110, 0.0
      %v1619 = vsel %vm1615, %v1109, 0.0
      %v1620 = vsel %vm1616, %v1110, 0.0
      %v1621 = vadd.f32 %v1617, %v1618
      %1622 = vadd.xlane.f32.xlu0 %v1621
      %v1623 = vpop.xlane.xlu0 %1622
      %v1624 = vadd.f32 %v1619, %v1620
      %1625 = vadd.xlane.f32.xlu0 %v1624
      %v1626 = vpop.xlane.xlu0 %1625
      %vm1627 = vcmp.gt.f32.partialorder %v1109, %v1623
      %vm1628 = vcmp.gt.f32.partialorder %v1110, %v1623
      %vm1629 = vcmp.gt.f32.partialorder %v1109, %v1626
      %vm1630 = vcmp.gt.f32.partialorder %v1110, %v1626
      %v1631 = vsel %vm1627, 1.0, 0.0
      %v1632 = vsel %vm1628, 1.0, 0.0
      %v1633 = vsel %vm1629, 1.0, 0.0
      %v1634 = vsel %vm1630, 1.0, 0.0
      %v1635 = vadd.f32 %v1631, %v1632
      %1636 = vadd.xlane.f32.xlu0 %v1635
      %v1637 = vpop.xlane.xlu0 %1636
      %v1638 = vadd.f32 %v1633, %v1634
      %1639 = vadd.xlane.f32.xlu0 %v1638
      %v1640 = vpop.xlane.xlu0 %1639
      %vm1641 = vcmp.lt.f32.partialorder %v1637, 25.0
      %vm1642 = vcmp.lt.f32.partialorder %v1640, 25.0
      %v1643 = vsel %vm1641, %v1623, inf
      %v1644 = vsel %vm1642, %v1626, inf
      %v1645 = vmin.f32 %v1609, %v1643
      %v1646 = vmin.f32 %v1610, %v1644
      %v1647 = vadd.s32 %v276, 240
      %v1648 = vadd.s32 %v277, 240
      %vm1649 = vcmp.eq.s32.totalorder %v273, %v1647
      %vm1650 = vcmp.eq.s32.totalorder %v274, %v1647
      %vm1651 = vcmp.eq.s32.totalorder %v273, %v1648
      %vm1652 = vcmp.eq.s32.totalorder %v274, %v1648
      %v1653 = vsel %vm1649, %v1109, 0.0
      %v1654 = vsel %vm1650, %v1110, 0.0
      %v1655 = vsel %vm1651, %v1109, 0.0
      %v1656 = vsel %vm1652, %v1110, 0.0
      %v1657 = vadd.f32 %v1653, %v1654
      %1658 = vadd.xlane.f32.xlu0 %v1657
      %v1659 = vpop.xlane.xlu0 %1658
      %v1660 = vadd.f32 %v1655, %v1656
      %1661 = vadd.xlane.f32.xlu0 %v1660
      %v1662 = vpop.xlane.xlu0 %1661
      %vm1663 = vcmp.gt.f32.partialorder %v1109, %v1659
      %vm1664 = vcmp.gt.f32.partialorder %v1110, %v1659
      %vm1665 = vcmp.gt.f32.partialorder %v1109, %v1662
      %vm1666 = vcmp.gt.f32.partialorder %v1110, %v1662
      %v1667 = vsel %vm1663, 1.0, 0.0
      %v1668 = vsel %vm1664, 1.0, 0.0
      %v1669 = vsel %vm1665, 1.0, 0.0
      %v1670 = vsel %vm1666, 1.0, 0.0
      %v1671 = vadd.f32 %v1667, %v1668
      %1672 = vadd.xlane.f32.xlu0 %v1671
      %v1673 = vpop.xlane.xlu0 %1672
      %v1674 = vadd.f32 %v1669, %v1670
      %1675 = vadd.xlane.f32.xlu0 %v1674
      %v1676 = vpop.xlane.xlu0 %1675
      %vm1677 = vcmp.lt.f32.partialorder %v1673, 25.0
      %vm1678 = vcmp.lt.f32.partialorder %v1676, 25.0
      %v1679 = vsel %vm1677, %v1659, inf
      %v1680 = vsel %vm1678, %v1662, inf
      %v1681 = vmin.f32 %v1645, %v1679
      %v1682 = vmin.f32 %v1646, %v1680
      %v1683 = vmin.f32 %v1681, %v1682
      %v1684 = vrot.slane %v1683, 4
      %v1685 = vmin.f32 %v1683, %v1684
      %v1686 = vrot.slane %v1685, 2
      %v1687 = vmin.f32 %v1685, %v1686
      %v1688 = vrot.slane %v1687, 1
      %v1689 = vmin.f32 %v1687, %v1688
      %vm1690 = vcmp.gt.f32.partialorder %v1109, %v1689
      %vm1691 = vcmp.gt.f32.partialorder %v1110, %v1689
      %v1692 = vsel %vm1690, 1.0, 0.0
      %v1693 = vsel %vm1691, 1.0, 0.0
      %v1694 = vadd.f32 %v1692, %v1693
      %1695 = vadd.xlane.f32.xlu0 %v1694
      %v1696 = vpop.xlane.xlu0 %1695
      %v1697 = vsel %vm1690, %v1109, 0.0
      %v1698 = vsel %vm1691, %v1110, 0.0
      %v1699 = vadd.f32 %v1697, %v1698
      %1700 = vadd.xlane.f32.xlu0 %v1699
      %v1701 = vpop.xlane.xlu0 %1700
      %v1702 = vsub.f32 25.0, %v1696
      %v1703 = vmul.f32 %v1689, %v1702
      %v1704 = vadd.f32 %v1701, %v1703
      %v1705 = vmul.f32 %v1704, 0.04
      %vm1706 = vcmask 0
      %1707 = vst.msk [vmem:[%s222] sm:$0x1] %vm1706, %v1705
      %p1708 = scmp.lt.s32.totalorder %s18, 1
      %s1709 = scalar_select %p1708, %s18, 1
      %s1710 = scalar_lea.vmem %s5, %s1709
      // Predicated region
      $region41: #{tpu_custom_call.1} parent=39 // pred_check
        %p1711 = pneg %p146
      $region42: #{tpu_custom_call.1} parent=39 // pred_check_branch
        %1713 = sbr.rel (%p1711) target = $region44
      $region43: #{tpu_custom_call.1} parent=39 // pred_region
        _
      $region44: #{tpu_custom_call.1} parent=39 // pred_fallthru
        _
    $region40: #{tpu_custom_call.1} parent=5 // pred_fallthru
      _
    %p1714 = scmp.le.s32.totalorder 2, %s13
    // Predicated region
    $region45: #{tpu_custom_call.1} parent=5 // pred_check
      %p1715 = pneg %p1714
    $region46: #{tpu_custom_call.1} parent=5 // pred_check_branch
      %1717 = sbr.rel (%p1715) target = $region48
    $region47: #{tpu_custom_call.1} parent=5 // pred_region
      %s1718 = ssub.s32 %s13, 2
      // Predicated region
      $region49: #{tpu_custom_call.1} parent=47 // pred_check
        %p1719 = pneg %p152
      $region50: #{tpu_custom_call.1} parent=47 // pred_check_branch
        %1721 = sbr.rel (%p1719) target = $region52
      $region51: #{tpu_custom_call.1} parent=47 // pred_region
        %p1722 = scmp.lt.s32.totalorder %s19, 1
        %s1723 = scalar_select %p1722, %s19, 1
        %s1724 = scalar_lea.vmem %s5, %s1723
      $region52: #{tpu_custom_call.1} parent=47 // pred_fallthru
        _
    $region48: #{tpu_custom_call.1} parent=5 // pred_fallthru
      _
  $region6: #{tpu_custom_call.1} parent=0 // loop_footer
    %s17 = sadd.s32 1, %s13
  $region7: #{tpu_custom_call.1} parent=0 // loop_footer_branch
    %12 = sbr.rel target = $region3
  $region8: #{tpu_custom_call.1} parent=0 // loop_exit
    _

</llo_original>
